<compile_context>
chip_gen: v5e
topology: v5e:2x2
jax: 0.10.0
libtpu: 0.0.40
codegen_flags: <defaults>
</compile_context>

<pallas_src>
import jax
import jax.numpy as jnp
from jax.experimental import pallas as pl
from jax.experimental.pallas import tpu as pltpu

IN_DIM = 3
HID_DIM = 7
OUT_DIM = 3
LANES = 128


def feedforward_kernel(x_ref, w1_ref, b1_ref, w2_ref, b2_ref, w3_ref, b3_ref, o_ref):
    # x_ref: (3, TS, 128) f32 in VMEM  (feature-major, batch packed on sublane/lane)
    # w*/b*: tiny f32 tables in SMEM, read element-wise as scalars (VPU broadcast)
    # o_ref: (3, TS, 128) f32 in VMEM
    x = [x_ref[k, :, :] for k in range(IN_DIM)]          # 3 x (TS, 128)

    # layer_1: Linear(3 -> 7) + relu  (i=0 < n_layers-1)
    h1 = []
    for j in range(HID_DIM):
        acc = b1_ref[j] + w1_ref[0, j] * x[0]
        for k in range(1, IN_DIM):
            acc = acc + w1_ref[k, j] * x[k]
        h1.append(jnp.maximum(acc, 0.0))

    # layer_2: Linear(7 -> 7), no activation (i=1 is NOT < n_layers-1)
    h2 = []
    for j in range(HID_DIM):
        acc = b2_ref[j] + w2_ref[0, j] * h1[0]
        for k in range(1, HID_DIM):
            acc = acc + w2_ref[k, j] * h1[k]
        h2.append(acc)

    # out: Linear(7 -> 3), output_activation=None
    for j in range(OUT_DIM):
        acc = b3_ref[j] + w3_ref[0, j] * h2[0]
        for k in range(1, HID_DIM):
            acc = acc + w3_ref[k, j] * h2[k]
        o_ref[j, :, :] = acc.astype(o_ref.dtype)


def feedforward(x, params, *, tb=2048):
    """x: (B, 3) float32; params: dict of w1,b1,w2,b2,w3,b3. Returns (B, 3)."""
    assert tb % (8 * LANES) == 0, "batch tile must be (8,128)-dense"
    B = x.shape[0]
    n_tiles = pl.cdiv(B, tb)
    b_pad = n_tiles * tb
    ts = tb // LANES

    # Layout plumbing (outside the kernel): batch onto the lane axis, packed
    # (sublane, lane)-dense, padded up to a whole number of tiles.
    xt = x.T                                              # (3, B)
    if b_pad != B:
        xt = jnp.pad(xt, ((0, 0), (0, b_pad - B)))
    xt = xt.reshape(IN_DIM, b_pad // LANES, LANES)        # (3, B_pad/128, 128)

    smem_spec = pl.BlockSpec(memory_space=pltpu.MemorySpace.SMEM)
    flops_per_row = 2 * (IN_DIM * HID_DIM + HID_DIM * HID_DIM + HID_DIM * OUT_DIM)

    out = pl.pallas_call(
        feedforward_kernel,
        out_shape=jax.ShapeDtypeStruct((OUT_DIM, b_pad // LANES, LANES), jnp.float32),
        grid=(n_tiles,),
        in_specs=[
            pl.BlockSpec((IN_DIM, ts, LANES), lambda i: (0, i, 0)),   # x tile
            smem_spec, smem_spec,                                     # w1, b1
            smem_spec, smem_spec,                                     # w2, b2
            smem_spec, smem_spec,                                     # w3, b3
        ],
        out_specs=pl.BlockSpec((OUT_DIM, ts, LANES), lambda i: (0, i, 0)),
        compiler_params=pltpu.CompilerParams(
            dimension_semantics=("parallel",)),
        cost_estimate=pl.CostEstimate(
            flops=flops_per_row * b_pad,
            transcendentals=0,
            bytes_accessed=(IN_DIM + OUT_DIM) * 4 * b_pad),
    )(
        xt,
        params["w1"], params["b1"],
        params["w2"], params["b2"],
        params["w3"], params["b3"],
    )

    out = out.reshape(OUT_DIM, b_pad)[:, :B]              # drop tail padding
    return out.T                                          # (B, 3)


def init_params(key):
    """PyTorch Linear(in, out) stores weight as (out, in); we store (in, out)
    so the kernel computes x @ W + b directly (same math)."""
    dims = [(IN_DIM, HID_DIM), (HID_DIM, HID_DIM), (HID_DIM, OUT_DIM)]
    params = {}
    keys = jax.random.split(key, 2 * len(dims))
    for i, (d_in, d_out) in enumerate(dims):
        bound = 1.0 / jnp.sqrt(float(d_in))
        params[f"w{i + 1}"] = jax.random.uniform(
            keys[2 * i], (d_in, d_out), jnp.float32, -bound, bound)
        params[f"b{i + 1}"] = jax.random.uniform(
            keys[2 * i + 1], (d_out,), jnp.float32, -bound, bound)
    return params


def feedforward_ref(x, p):
    hi = jax.lax.Precision.HIGHEST
    h = jnp.maximum(jnp.dot(x, p["w1"], precision=hi) + p["b1"], 0.0)
    h = jnp.dot(h, p["w2"], precision=hi) + p["b2"]
    return jnp.dot(h, p["w3"], precision=hi) + p["b3"]


if __name__ == "__main__":
    key = jax.random.PRNGKey(0)
    k_param, k_x = jax.random.split(key)

    params = init_params(k_param)
    B = 2500                              # not a tile multiple -> exercises padding
    x = jax.random.normal(k_x, (B, IN_DIM), jnp.float32)

    out = feedforward(x, params, tb=1024)  # 3 grid steps, TS=8 sublane-dense tiles
    out = jax.block_until_ready(out)

    ref = feedforward_ref(x, params)
    assert out.shape == (B, OUT_DIM)
    assert jnp.allclose(out, ref, atol=1e-5, rtol=1e-5), "mismatch vs reference"

    print("KERNEL_OK")
</pallas_src>

<mosaic_0001>
module attributes {stable_mosaic.version = 11 : i64} {
  func.func @feedforward_kernel(%arg0: i32, %arg1: memref<3x8x128xf32, #tpu.memory_space<vmem>>, %arg2: memref<3x7xf32, #tpu.memory_space<smem>>, %arg3: memref<7xf32, #tpu.memory_space<smem>>, %arg4: memref<7x7xf32, #tpu.memory_space<smem>>, %arg5: memref<7xf32, #tpu.memory_space<smem>>, %arg6: memref<7x3xf32, #tpu.memory_space<smem>>, %arg7: memref<3xf32, #tpu.memory_space<smem>>, %arg8: memref<3x8x128xf32, #tpu.memory_space<vmem>>) attributes {dimension_semantics = [#tpu.dimension_semantics<parallel>], iteration_bounds = array<i64: 3>, scalar_prefetch = 0 : i64, scratch_operands = 0 : i64, tpu.core_type = #tpu.core_type<tc>, window_params = [{transform_indices = @transform_0, window_bounds = array<i64: 3, 8, 128>}, {transform_indices = @transform_1, window_bounds = array<i64: 3, 7>}, {transform_indices = @transform_2, window_bounds = array<i64: 7>}, {transform_indices = @transform_3, window_bounds = array<i64: 7, 7>}, {transform_indices = @transform_4, window_bounds = array<i64: 7>}, {transform_indices = @transform_5, window_bounds = array<i64: 7, 3>}, {transform_indices = @transform_6, window_bounds = array<i64: 3>}, {transform_indices = @transform_7, window_bounds = array<i64: 3, 8, 128>}]} {
    %c0 = arith.constant 0 : index
    %c0_0 = arith.constant 0 : index
    %c0_1 = arith.constant 0 : index
    %0 = vector.load %arg1[%c0, %c0_0, %c0_1] : memref<3x8x128xf32, #tpu.memory_space<vmem>>, vector<1x8x128xf32>
    %1 = vector.shape_cast %0 : vector<1x8x128xf32> to vector<8x128xf32>
    %c1 = arith.constant 1 : index
    %c0_2 = arith.constant 0 : index
    %c0_3 = arith.constant 0 : index
    %2 = vector.load %arg1[%c1, %c0_2, %c0_3] : memref<3x8x128xf32, #tpu.memory_space<vmem>>, vector<1x8x128xf32>
    %3 = vector.shape_cast %2 : vector<1x8x128xf32> to vector<8x128xf32>
    %c2 = arith.constant 2 : index
    %c0_4 = arith.constant 0 : index
    %c0_5 = arith.constant 0 : index
    %4 = vector.load %arg1[%c2, %c0_4, %c0_5] : memref<3x8x128xf32, #tpu.memory_space<vmem>>, vector<1x8x128xf32>
    %5 = vector.shape_cast %4 : vector<1x8x128xf32> to vector<8x128xf32>
    %c0_6 = arith.constant 0 : index
    %6 = memref.load %arg3[%c0_6] : memref<7xf32, #tpu.memory_space<smem>>
    %c0_7 = arith.constant 0 : index
    %c0_8 = arith.constant 0 : index
    %7 = memref.load %arg2[%c0_7, %c0_8] : memref<3x7xf32, #tpu.memory_space<smem>>
    %8 = vector.broadcast %7 : f32 to vector<8x128xf32>
    %9 = arith.mulf %8, %1 : vector<8x128xf32>
    %10 = vector.broadcast %6 : f32 to vector<8x128xf32>
    %11 = arith.addf %10, %9 : vector<8x128xf32>
    %c1_9 = arith.constant 1 : index
    %c0_10 = arith.constant 0 : index
    %12 = memref.load %arg2[%c1_9, %c0_10] : memref<3x7xf32, #tpu.memory_space<smem>>
    %13 = vector.broadcast %12 : f32 to vector<8x128xf32>
    %14 = arith.mulf %13, %3 : vector<8x128xf32>
    %15 = arith.addf %11, %14 : vector<8x128xf32>
    %c2_11 = arith.constant 2 : index
    %c0_12 = arith.constant 0 : index
    %16 = memref.load %arg2[%c2_11, %c0_12] : memref<3x7xf32, #tpu.memory_space<smem>>
    %17 = vector.broadcast %16 : f32 to vector<8x128xf32>
    %18 = arith.mulf %17, %5 : vector<8x128xf32>
    %19 = arith.addf %15, %18 : vector<8x128xf32>
    %cst = arith.constant 0.000000e+00 : f32
    %20 = vector.broadcast %cst : f32 to vector<8x128xf32>
    %21 = arith.maximumf %19, %20 : vector<8x128xf32>
    %c1_13 = arith.constant 1 : index
    %22 = memref.load %arg3[%c1_13] : memref<7xf32, #tpu.memory_space<smem>>
    %c0_14 = arith.constant 0 : index
    %c1_15 = arith.constant 1 : index
    %23 = memref.load %arg2[%c0_14, %c1_15] : memref<3x7xf32, #tpu.memory_space<smem>>
    %24 = vector.broadcast %23 : f32 to vector<8x128xf32>
    %25 = arith.mulf %24, %1 : vector<8x128xf32>
    %26 = vector.broadcast %22 : f32 to vector<8x128xf32>
    %27 = arith.addf %26, %25 : vector<8x128xf32>
    %c1_16 = arith.constant 1 : index
    %c1_17 = arith.constant 1 : index
    %28 = memref.load %arg2[%c1_16, %c1_17] : memref<3x7xf32, #tpu.memory_space<smem>>
    %29 = vector.broadcast %28 : f32 to vector<8x128xf32>
    %30 = arith.mulf %29, %3 : vector<8x128xf32>
    %31 = arith.addf %27, %30 : vector<8x128xf32>
    %c2_18 = arith.constant 2 : index
    %c1_19 = arith.constant 1 : index
    %32 = memref.load %arg2[%c2_18, %c1_19] : memref<3x7xf32, #tpu.memory_space<smem>>
    %33 = vector.broadcast %32 : f32 to vector<8x128xf32>
    %34 = arith.mulf %33, %5 : vector<8x128xf32>
    %35 = arith.addf %31, %34 : vector<8x128xf32>
    %cst_20 = arith.constant 0.000000e+00 : f32
    %36 = vector.broadcast %cst_20 : f32 to vector<8x128xf32>
    %37 = arith.maximumf %35, %36 : vector<8x128xf32>
    %c2_21 = arith.constant 2 : index
    %38 = memref.load %arg3[%c2_21] : memref<7xf32, #tpu.memory_space<smem>>
    %c0_22 = arith.constant 0 : index
    %c2_23 = arith.constant 2 : index
    %39 = memref.load %arg2[%c0_22, %c2_23] : memref<3x7xf32, #tpu.memory_space<smem>>
    %40 = vector.broadcast %39 : f32 to vector<8x128xf32>
    %41 = arith.mulf %40, %1 : vector<8x128xf32>
    %42 = vector.broadcast %38 : f32 to vector<8x128xf32>
    %43 = arith.addf %42, %41 : vector<8x128xf32>
    %c1_24 = arith.constant 1 : index
    %c2_25 = arith.constant 2 : index
    %44 = memref.load %arg2[%c1_24, %c2_25] : memref<3x7xf32, #tpu.memory_space<smem>>
    %45 = vector.broadcast %44 : f32 to vector<8x128xf32>
    %46 = arith.mulf %45, %3 : vector<8x128xf32>
    %47 = arith.addf %43, %46 : vector<8x128xf32>
    %c2_26 = arith.constant 2 : index
    %c2_27 = arith.constant 2 : index
    %48 = memref.load %arg2[%c2_26, %c2_27] : memref<3x7xf32, #tpu.memory_space<smem>>
    %49 = vector.broadcast %48 : f32 to vector<8x128xf32>
    %50 = arith.mulf %49, %5 : vector<8x128xf32>
    %51 = arith.addf %47, %50 : vector<8x128xf32>
    %cst_28 = arith.constant 0.000000e+00 : f32
    %52 = vector.broadcast %cst_28 : f32 to vector<8x128xf32>
    %53 = arith.maximumf %51, %52 : vector<8x128xf32>
    %c3 = arith.constant 3 : index
    %54 = memref.load %arg3[%c3] : memref<7xf32, #tpu.memory_space<smem>>
    %c0_29 = arith.constant 0 : index
    %c3_30 = arith.constant 3 : index
    %55 = memref.load %arg2[%c0_29, %c3_30] : memref<3x7xf32, #tpu.memory_space<smem>>
    %56 = vector.broadcast %55 : f32 to vector<8x128xf32>
    %57 = arith.mulf %56, %1 : vector<8x128xf32>
    %58 = vector.broadcast %54 : f32 to vector<8x128xf32>
    %59 = arith.addf %58, %57 : vector<8x128xf32>
    %c1_31 = arith.constant 1 : index
    %c3_32 = arith.constant 3 : index
    %60 = memref.load %arg2[%c1_31, %c3_32] : memref<3x7xf32, #tpu.memory_space<smem>>
    %61 = vector.broadcast %60 : f32 to vector<8x128xf32>
    %62 = arith.mulf %61, %3 : vector<8x128xf32>
    %63 = arith.addf %59, %62 : vector<8x128xf32>
    %c2_33 = arith.constant 2 : index
    %c3_34 = arith.constant 3 : index
    %64 = memref.load %arg2[%c2_33, %c3_34] : memref<3x7xf32, #tpu.memory_space<smem>>
    %65 = vector.broadcast %64 : f32 to vector<8x128xf32>
    %66 = arith.mulf %65, %5 : vector<8x128xf32>
    %67 = arith.addf %63, %66 : vector<8x128xf32>
    %cst_35 = arith.constant 0.000000e+00 : f32
    %68 = vector.broadcast %cst_35 : f32 to vector<8x128xf32>
    %69 = arith.maximumf %67, %68 : vector<8x128xf32>
    %c4 = arith.constant 4 : index
    %70 = memref.load %arg3[%c4] : memref<7xf32, #tpu.memory_space<smem>>
    %c0_36 = arith.constant 0 : index
    %c4_37 = arith.constant 4 : index
    %71 = memref.load %arg2[%c0_36, %c4_37] : memref<3x7xf32, #tpu.memory_space<smem>>
    %72 = vector.broadcast %71 : f32 to vector<8x128xf32>
    %73 = arith.mulf %72, %1 : vector<8x128xf32>
    %74 = vector.broadcast %70 : f32 to vector<8x128xf32>
    %75 = arith.addf %74, %73 : vector<8x128xf32>
    %c1_38 = arith.constant 1 : index
    %c4_39 = arith.constant 4 : index
    %76 = memref.load %arg2[%c1_38, %c4_39] : memref<3x7xf32, #tpu.memory_space<smem>>
    %77 = vector.broadcast %76 : f32 to vector<8x128xf32>
    %78 = arith.mulf %77, %3 : vector<8x128xf32>
    %79 = arith.addf %75, %78 : vector<8x128xf32>
    %c2_40 = arith.constant 2 : index
    %c4_41 = arith.constant 4 : index
    %80 = memref.load %arg2[%c2_40, %c4_41] : memref<3x7xf32, #tpu.memory_space<smem>>
    %81 = vector.broadcast %80 : f32 to vector<8x128xf32>
    %82 = arith.mulf %81, %5 : vector<8x128xf32>
    %83 = arith.addf %79, %82 : vector<8x128xf32>
    %cst_42 = arith.constant 0.000000e+00 : f32
    %84 = vector.broadcast %cst_42 : f32 to vector<8x128xf32>
    %85 = arith.maximumf %83, %84 : vector<8x128xf32>
    %c5 = arith.constant 5 : index
    %86 = memref.load %arg3[%c5] : memref<7xf32, #tpu.memory_space<smem>>
    %c0_43 = arith.constant 0 : index
    %c5_44 = arith.constant 5 : index
    %87 = memref.load %arg2[%c0_43, %c5_44] : memref<3x7xf32, #tpu.memory_space<smem>>
    %88 = vector.broadcast %87 : f32 to vector<8x128xf32>
    %89 = arith.mulf %88, %1 : vector<8x128xf32>
    %90 = vector.broadcast %86 : f32 to vector<8x128xf32>
    %91 = arith.addf %90, %89 : vector<8x128xf32>
    %c1_45 = arith.constant 1 : index
    %c5_46 = arith.constant 5 : index
    %92 = memref.load %arg2[%c1_45, %c5_46] : memref<3x7xf32, #tpu.memory_space<smem>>
    %93 = vector.broadcast %92 : f32 to vector<8x128xf32>
    %94 = arith.mulf %93, %3 : vector<8x128xf32>
    %95 = arith.addf %91, %94 : vector<8x128xf32>
    %c2_47 = arith.constant 2 : index
    %c5_48 = arith.constant 5 : index
    %96 = memref.load %arg2[%c2_47, %c5_48] : memref<3x7xf32, #tpu.memory_space<smem>>
    %97 = vector.broadcast %96 : f32 to vector<8x128xf32>
    %98 = arith.mulf %97, %5 : vector<8x128xf32>
    %99 = arith.addf %95, %98 : vector<8x128xf32>
    %cst_49 = arith.constant 0.000000e+00 : f32
    %100 = vector.broadcast %cst_49 : f32 to vector<8x128xf32>
    %101 = arith.maximumf %99, %100 : vector<8x128xf32>
    %c6 = arith.constant 6 : index
    %102 = memref.load %arg3[%c6] : memref<7xf32, #tpu.memory_space<smem>>
    %c0_50 = arith.constant 0 : index
    %c6_51 = arith.constant 6 : index
    %103 = memref.load %arg2[%c0_50, %c6_51] : memref<3x7xf32, #tpu.memory_space<smem>>
    %104 = vector.broadcast %103 : f32 to vector<8x128xf32>
    %105 = arith.mulf %104, %1 : vector<8x128xf32>
    %106 = vector.broadcast %102 : f32 to vector<8x128xf32>
    %107 = arith.addf %106, %105 : vector<8x128xf32>
    %c1_52 = arith.constant 1 : index
    %c6_53 = arith.constant 6 : index
    %108 = memref.load %arg2[%c1_52, %c6_53] : memref<3x7xf32, #tpu.memory_space<smem>>
    %109 = vector.broadcast %108 : f32 to vector<8x128xf32>
    %110 = arith.mulf %109, %3 : vector<8x128xf32>
    %111 = arith.addf %107, %110 : vector<8x128xf32>
    %c2_54 = arith.constant 2 : index
    %c6_55 = arith.constant 6 : index
    %112 = memref.load %arg2[%c2_54, %c6_55] : memref<3x7xf32, #tpu.memory_space<smem>>
    %113 = vector.broadcast %112 : f32 to vector<8x128xf32>
    %114 = arith.mulf %113, %5 : vector<8x128xf32>
    %115 = arith.addf %111, %114 : vector<8x128xf32>
    %cst_56 = arith.constant 0.000000e+00 : f32
    %116 = vector.broadcast %cst_56 : f32 to vector<8x128xf32>
    %117 = arith.maximumf %115, %116 : vector<8x128xf32>
    %c0_57 = arith.constant 0 : index
    %118 = memref.load %arg5[%c0_57] : memref<7xf32, #tpu.memory_space<smem>>
    %c0_58 = arith.constant 0 : index
    %c0_59 = arith.constant 0 : index
    %119 = memref.load %arg4[%c0_58, %c0_59] : memref<7x7xf32, #tpu.memory_space<smem>>
    %120 = vector.broadcast %119 : f32 to vector<8x128xf32>
    %121 = arith.mulf %120, %21 : vector<8x128xf32>
    %122 = vector.broadcast %118 : f32 to vector<8x128xf32>
    %123 = arith.addf %122, %121 : vector<8x128xf32>
    %c1_60 = arith.constant 1 : index
    %c0_61 = arith.constant 0 : index
    %124 = memref.load %arg4[%c1_60, %c0_61] : memref<7x7xf32, #tpu.memory_space<smem>>
    %125 = vector.broadcast %124 : f32 to vector<8x128xf32>
    %126 = arith.mulf %125, %37 : vector<8x128xf32>
    %127 = arith.addf %123, %126 : vector<8x128xf32>
    %c2_62 = arith.constant 2 : index
    %c0_63 = arith.constant 0 : index
    %128 = memref.load %arg4[%c2_62, %c0_63] : memref<7x7xf32, #tpu.memory_space<smem>>
    %129 = vector.broadcast %128 : f32 to vector<8x128xf32>
    %130 = arith.mulf %129, %53 : vector<8x128xf32>
    %131 = arith.addf %127, %130 : vector<8x128xf32>
    %c3_64 = arith.constant 3 : index
    %c0_65 = arith.constant 0 : index
    %132 = memref.load %arg4[%c3_64, %c0_65] : memref<7x7xf32, #tpu.memory_space<smem>>
    %133 = vector.broadcast %132 : f32 to vector<8x128xf32>
    %134 = arith.mulf %133, %69 : vector<8x128xf32>
    %135 = arith.addf %131, %134 : vector<8x128xf32>
    %c4_66 = arith.constant 4 : index
    %c0_67 = arith.constant 0 : index
    %136 = memref.load %arg4[%c4_66, %c0_67] : memref<7x7xf32, #tpu.memory_space<smem>>
    %137 = vector.broadcast %136 : f32 to vector<8x128xf32>
    %138 = arith.mulf %137, %85 : vector<8x128xf32>
    %139 = arith.addf %135, %138 : vector<8x128xf32>
    %c5_68 = arith.constant 5 : index
    %c0_69 = arith.constant 0 : index
    %140 = memref.load %arg4[%c5_68, %c0_69] : memref<7x7xf32, #tpu.memory_space<smem>>
    %141 = vector.broadcast %140 : f32 to vector<8x128xf32>
    %142 = arith.mulf %141, %101 : vector<8x128xf32>
    %143 = arith.addf %139, %142 : vector<8x128xf32>
    %c6_70 = arith.constant 6 : index
    %c0_71 = arith.constant 0 : index
    %144 = memref.load %arg4[%c6_70, %c0_71] : memref<7x7xf32, #tpu.memory_space<smem>>
    %145 = vector.broadcast %144 : f32 to vector<8x128xf32>
    %146 = arith.mulf %145, %117 : vector<8x128xf32>
    %147 = arith.addf %143, %146 : vector<8x128xf32>
    %c1_72 = arith.constant 1 : index
    %148 = memref.load %arg5[%c1_72] : memref<7xf32, #tpu.memory_space<smem>>
    %c0_73 = arith.constant 0 : index
    %c1_74 = arith.constant 1 : index
    %149 = memref.load %arg4[%c0_73, %c1_74] : memref<7x7xf32, #tpu.memory_space<smem>>
    %150 = vector.broadcast %149 : f32 to vector<8x128xf32>
    %151 = arith.mulf %150, %21 : vector<8x128xf32>
    %152 = vector.broadcast %148 : f32 to vector<8x128xf32>
    %153 = arith.addf %152, %151 : vector<8x128xf32>
    %c1_75 = arith.constant 1 : index
    %c1_76 = arith.constant 1 : index
    %154 = memref.load %arg4[%c1_75, %c1_76] : memref<7x7xf32, #tpu.memory_space<smem>>
    %155 = vector.broadcast %154 : f32 to vector<8x128xf32>
    %156 = arith.mulf %155, %37 : vector<8x128xf32>
    %157 = arith.addf %153, %156 : vector<8x128xf32>
    %c2_77 = arith.constant 2 : index
    %c1_78 = arith.constant 1 : index
    %158 = memref.load %arg4[%c2_77, %c1_78] : memref<7x7xf32, #tpu.memory_space<smem>>
    %159 = vector.broadcast %158 : f32 to vector<8x128xf32>
    %160 = arith.mulf %159, %53 : vector<8x128xf32>
    %161 = arith.addf %157, %160 : vector<8x128xf32>
    %c3_79 = arith.constant 3 : index
    %c1_80 = arith.constant 1 : index
    %162 = memref.load %arg4[%c3_79, %c1_80] : memref<7x7xf32, #tpu.memory_space<smem>>
    %163 = vector.broadcast %162 : f32 to vector<8x128xf32>
    %164 = arith.mulf %163, %69 : vector<8x128xf32>
    %165 = arith.addf %161, %164 : vector<8x128xf32>
    %c4_81 = arith.constant 4 : index
    %c1_82 = arith.constant 1 : index
    %166 = memref.load %arg4[%c4_81, %c1_82] : memref<7x7xf32, #tpu.memory_space<smem>>
    %167 = vector.broadcast %166 : f32 to vector<8x128xf32>
    %168 = arith.mulf %167, %85 : vector<8x128xf32>
    %169 = arith.addf %165, %168 : vector<8x128xf32>
    %c5_83 = arith.constant 5 : index
    %c1_84 = arith.constant 1 : index
    %170 = memref.load %arg4[%c5_83, %c1_84] : memref<7x7xf32, #tpu.memory_space<smem>>
    %171 = vector.broadcast %170 : f32 to vector<8x128xf32>
    %172 = arith.mulf %171, %101 : vector<8x128xf32>
    %173 = arith.addf %169, %172 : vector<8x128xf32>
    %c6_85 = arith.constant 6 : index
    %c1_86 = arith.constant 1 : index
    %174 = memref.load %arg4[%c6_85, %c1_86] : memref<7x7xf32, #tpu.memory_space<smem>>
    %175 = vector.broadcast %174 : f32 to vector<8x128xf32>
    %176 = arith.mulf %175, %117 : vector<8x128xf32>
    %177 = arith.addf %173, %176 : vector<8x128xf32>
    %c2_87 = arith.constant 2 : index
    %178 = memref.load %arg5[%c2_87] : memref<7xf32, #tpu.memory_space<smem>>
    %c0_88 = arith.constant 0 : index
    %c2_89 = arith.constant 2 : index
    %179 = memref.load %arg4[%c0_88, %c2_89] : memref<7x7xf32, #tpu.memory_space<smem>>
    %180 = vector.broadcast %179 : f32 to vector<8x128xf32>
    %181 = arith.mulf %180, %21 : vector<8x128xf32>
    %182 = vector.broadcast %178 : f32 to vector<8x128xf32>
    %183 = arith.addf %182, %181 : vector<8x128xf32>
    %c1_90 = arith.constant 1 : index
    %c2_91 = arith.constant 2 : index
    %184 = memref.load %arg4[%c1_90, %c2_91] : memref<7x7xf32, #tpu.memory_space<smem>>
    %185 = vector.broadcast %184 : f32 to vector<8x128xf32>
    %186 = arith.mulf %185, %37 : vector<8x128xf32>
    %187 = arith.addf %183, %186 : vector<8x128xf32>
    %c2_92 = arith.constant 2 : index
    %c2_93 = arith.constant 2 : index
    %188 = memref.load %arg4[%c2_92, %c2_93] : memref<7x7xf32, #tpu.memory_space<smem>>
    %189 = vector.broadcast %188 : f32 to vector<8x128xf32>
    %190 = arith.mulf %189, %53 : vector<8x128xf32>
    %191 = arith.addf %187, %190 : vector<8x128xf32>
    %c3_94 = arith.constant 3 : index
    %c2_95 = arith.constant 2 : index
    %192 = memref.load %arg4[%c3_94, %c2_95] : memref<7x7xf32, #tpu.memory_space<smem>>
    %193 = vector.broadcast %192 : f32 to vector<8x128xf32>
    %194 = arith.mulf %193, %69 : vector<8x128xf32>
    %195 = arith.addf %191, %194 : vector<8x128xf32>
    %c4_96 = arith.constant 4 : index
    %c2_97 = arith.constant 2 : index
    %196 = memref.load %arg4[%c4_96, %c2_97] : memref<7x7xf32, #tpu.memory_space<smem>>
    %197 = vector.broadcast %196 : f32 to vector<8x128xf32>
    %198 = arith.mulf %197, %85 : vector<8x128xf32>
    %199 = arith.addf %195, %198 : vector<8x128xf32>
    %c5_98 = arith.constant 5 : index
    %c2_99 = arith.constant 2 : index
    %200 = memref.load %arg4[%c5_98, %c2_99] : memref<7x7xf32, #tpu.memory_space<smem>>
    %201 = vector.broadcast %200 : f32 to vector<8x128xf32>
    %202 = arith.mulf %201, %101 : vector<8x128xf32>
    %203 = arith.addf %199, %202 : vector<8x128xf32>
    %c6_100 = arith.constant 6 : index
    %c2_101 = arith.constant 2 : index
    %204 = memref.load %arg4[%c6_100, %c2_101] : memref<7x7xf32, #tpu.memory_space<smem>>
    %205 = vector.broadcast %204 : f32 to vector<8x128xf32>
    %206 = arith.mulf %205, %117 : vector<8x128xf32>
    %207 = arith.addf %203, %206 : vector<8x128xf32>
    %c3_102 = arith.constant 3 : index
    %208 = memref.load %arg5[%c3_102] : memref<7xf32, #tpu.memory_space<smem>>
    %c0_103 = arith.constant 0 : index
    %c3_104 = arith.constant 3 : index
    %209 = memref.load %arg4[%c0_103, %c3_104] : memref<7x7xf32, #tpu.memory_space<smem>>
    %210 = vector.broadcast %209 : f32 to vector<8x128xf32>
    %211 = arith.mulf %210, %21 : vector<8x128xf32>
    %212 = vector.broadcast %208 : f32 to vector<8x128xf32>
    %213 = arith.addf %212, %211 : vector<8x128xf32>
    %c1_105 = arith.constant 1 : index
    %c3_106 = arith.constant 3 : index
    %214 = memref.load %arg4[%c1_105, %c3_106] : memref<7x7xf32, #tpu.memory_space<smem>>
    %215 = vector.broadcast %214 : f32 to vector<8x128xf32>
    %216 = arith.mulf %215, %37 : vector<8x128xf32>
    %217 = arith.addf %213, %216 : vector<8x128xf32>
    %c2_107 = arith.constant 2 : index
    %c3_108 = arith.constant 3 : index
    %218 = memref.load %arg4[%c2_107, %c3_108] : memref<7x7xf32, #tpu.memory_space<smem>>
    %219 = vector.broadcast %218 : f32 to vector<8x128xf32>
    %220 = arith.mulf %219, %53 : vector<8x128xf32>
    %221 = arith.addf %217, %220 : vector<8x128xf32>
    %c3_109 = arith.constant 3 : index
    %c3_110 = arith.constant 3 : index
    %222 = memref.load %arg4[%c3_109, %c3_110] : memref<7x7xf32, #tpu.memory_space<smem>>
    %223 = vector.broadcast %222 : f32 to vector<8x128xf32>
    %224 = arith.mulf %223, %69 : vector<8x128xf32>
    %225 = arith.addf %221, %224 : vector<8x128xf32>
    %c4_111 = arith.constant 4 : index
    %c3_112 = arith.constant 3 : index
    %226 = memref.load %arg4[%c4_111, %c3_112] : memref<7x7xf32, #tpu.memory_space<smem>>
    %227 = vector.broadcast %226 : f32 to vector<8x128xf32>
    %228 = arith.mulf %227, %85 : vector<8x128xf32>
    %229 = arith.addf %225, %228 : vector<8x128xf32>
    %c5_113 = arith.constant 5 : index
    %c3_114 = arith.constant 3 : index
    %230 = memref.load %arg4[%c5_113, %c3_114] : memref<7x7xf32, #tpu.memory_space<smem>>
    %231 = vector.broadcast %230 : f32 to vector<8x128xf32>
    %232 = arith.mulf %231, %101 : vector<8x128xf32>
    %233 = arith.addf %229, %232 : vector<8x128xf32>
    %c6_115 = arith.constant 6 : index
    %c3_116 = arith.constant 3 : index
    %234 = memref.load %arg4[%c6_115, %c3_116] : memref<7x7xf32, #tpu.memory_space<smem>>
    %235 = vector.broadcast %234 : f32 to vector<8x128xf32>
    %236 = arith.mulf %235, %117 : vector<8x128xf32>
    %237 = arith.addf %233, %236 : vector<8x128xf32>
    %c4_117 = arith.constant 4 : index
    %238 = memref.load %arg5[%c4_117] : memref<7xf32, #tpu.memory_space<smem>>
    %c0_118 = arith.constant 0 : index
    %c4_119 = arith.constant 4 : index
    %239 = memref.load %arg4[%c0_118, %c4_119] : memref<7x7xf32, #tpu.memory_space<smem>>
    %240 = vector.broadcast %239 : f32 to vector<8x128xf32>
    %241 = arith.mulf %240, %21 : vector<8x128xf32>
    %242 = vector.broadcast %238 : f32 to vector<8x128xf32>
    %243 = arith.addf %242, %241 : vector<8x128xf32>
    %c1_120 = arith.constant 1 : index
    %c4_121 = arith.constant 4 : index
    %244 = memref.load %arg4[%c1_120, %c4_121] : memref<7x7xf32, #tpu.memory_space<smem>>
    %245 = vector.broadcast %244 : f32 to vector<8x128xf32>
    %246 = arith.mulf %245, %37 : vector<8x128xf32>
    %247 = arith.addf %243, %246 : vector<8x128xf32>
    %c2_122 = arith.constant 2 : index
    %c4_123 = arith.constant 4 : index
    %248 = memref.load %arg4[%c2_122, %c4_123] : memref<7x7xf32, #tpu.memory_space<smem>>
    %249 = vector.broadcast %248 : f32 to vector<8x128xf32>
    %250 = arith.mulf %249, %53 : vector<8x128xf32>
    %251 = arith.addf %247, %250 : vector<8x128xf32>
    %c3_124 = arith.constant 3 : index
    %c4_125 = arith.constant 4 : index
    %252 = memref.load %arg4[%c3_124, %c4_125] : memref<7x7xf32, #tpu.memory_space<smem>>
    %253 = vector.broadcast %252 : f32 to vector<8x128xf32>
    %254 = arith.mulf %253, %69 : vector<8x128xf32>
    %255 = arith.addf %251, %254 : vector<8x128xf32>
    %c4_126 = arith.constant 4 : index
    %c4_127 = arith.constant 4 : index
    %256 = memref.load %arg4[%c4_126, %c4_127] : memref<7x7xf32, #tpu.memory_space<smem>>
    %257 = vector.broadcast %256 : f32 to vector<8x128xf32>
    %258 = arith.mulf %257, %85 : vector<8x128xf32>
    %259 = arith.addf %255, %258 : vector<8x128xf32>
    %c5_128 = arith.constant 5 : index
    %c4_129 = arith.constant 4 : index
    %260 = memref.load %arg4[%c5_128, %c4_129] : memref<7x7xf32, #tpu.memory_space<smem>>
    %261 = vector.broadcast %260 : f32 to vector<8x128xf32>
    %262 = arith.mulf %261, %101 : vector<8x128xf32>
    %263 = arith.addf %259, %262 : vector<8x128xf32>
    %c6_130 = arith.constant 6 : index
    %c4_131 = arith.constant 4 : index
    %264 = memref.load %arg4[%c6_130, %c4_131] : memref<7x7xf32, #tpu.memory_space<smem>>
    %265 = vector.broadcast %264 : f32 to vector<8x128xf32>
    %266 = arith.mulf %265, %117 : vector<8x128xf32>
    %267 = arith.addf %263, %266 : vector<8x128xf32>
    %c5_132 = arith.constant 5 : index
    %268 = memref.load %arg5[%c5_132] : memref<7xf32, #tpu.memory_space<smem>>
    %c0_133 = arith.constant 0 : index
    %c5_134 = arith.constant 5 : index
    %269 = memref.load %arg4[%c0_133, %c5_134] : memref<7x7xf32, #tpu.memory_space<smem>>
    %270 = vector.broadcast %269 : f32 to vector<8x128xf32>
    %271 = arith.mulf %270, %21 : vector<8x128xf32>
    %272 = vector.broadcast %268 : f32 to vector<8x128xf32>
    %273 = arith.addf %272, %271 : vector<8x128xf32>
    %c1_135 = arith.constant 1 : index
    %c5_136 = arith.constant 5 : index
    %274 = memref.load %arg4[%c1_135, %c5_136] : memref<7x7xf32, #tpu.memory_space<smem>>
    %275 = vector.broadcast %274 : f32 to vector<8x128xf32>
    %276 = arith.mulf %275, %37 : vector<8x128xf32>
    %277 = arith.addf %273, %276 : vector<8x128xf32>
    %c2_137 = arith.constant 2 : index
    %c5_138 = arith.constant 5 : index
    %278 = memref.load %arg4[%c2_137, %c5_138] : memref<7x7xf32, #tpu.memory_space<smem>>
    %279 = vector.broadcast %278 : f32 to vector<8x128xf32>
    %280 = arith.mulf %279, %53 : vector<8x128xf32>
    %281 = arith.addf %277, %280 : vector<8x128xf32>
    %c3_139 = arith.constant 3 : index
    %c5_140 = arith.constant 5 : index
    %282 = memref.load %arg4[%c3_139, %c5_140] : memref<7x7xf32, #tpu.memory_space<smem>>
    %283 = vector.broadcast %282 : f32 to vector<8x128xf32>
    %284 = arith.mulf %283, %69 : vector<8x128xf32>
    %285 = arith.addf %281, %284 : vector<8x128xf32>
    %c4_141 = arith.constant 4 : index
    %c5_142 = arith.constant 5 : index
    %286 = memref.load %arg4[%c4_141, %c5_142] : memref<7x7xf32, #tpu.memory_space<smem>>
    %287 = vector.broadcast %286 : f32 to vector<8x128xf32>
    %288 = arith.mulf %287, %85 : vector<8x128xf32>
    %289 = arith.addf %285, %288 : vector<8x128xf32>
    %c5_143 = arith.constant 5 : index
    %c5_144 = arith.constant 5 : index
    %290 = memref.load %arg4[%c5_143, %c5_144] : memref<7x7xf32, #tpu.memory_space<smem>>
    %291 = vector.broadcast %290 : f32 to vector<8x128xf32>
    %292 = arith.mulf %291, %101 : vector<8x128xf32>
    %293 = arith.addf %289, %292 : vector<8x128xf32>
    %c6_145 = arith.constant 6 : index
    %c5_146 = arith.constant 5 : index
    %294 = memref.load %arg4[%c6_145, %c5_146] : memref<7x7xf32, #tpu.memory_space<smem>>
    %295 = vector.broadcast %294 : f32 to vector<8x128xf32>
    %296 = arith.mulf %295, %117 : vector<8x128xf32>
    %297 = arith.addf %293, %296 : vector<8x128xf32>
    %c6_147 = arith.constant 6 : index
    %298 = memref.load %arg5[%c6_147] : memref<7xf32, #tpu.memory_space<smem>>
    %c0_148 = arith.constant 0 : index
    %c6_149 = arith.constant 6 : index
    %299 = memref.load %arg4[%c0_148, %c6_149] : memref<7x7xf32, #tpu.memory_space<smem>>
    %300 = vector.broadcast %299 : f32 to vector<8x128xf32>
    %301 = arith.mulf %300, %21 : vector<8x128xf32>
    %302 = vector.broadcast %298 : f32 to vector<8x128xf32>
    %303 = arith.addf %302, %301 : vector<8x128xf32>
    %c1_150 = arith.constant 1 : index
    %c6_151 = arith.constant 6 : index
    %304 = memref.load %arg4[%c1_150, %c6_151] : memref<7x7xf32, #tpu.memory_space<smem>>
    %305 = vector.broadcast %304 : f32 to vector<8x128xf32>
    %306 = arith.mulf %305, %37 : vector<8x128xf32>
    %307 = arith.addf %303, %306 : vector<8x128xf32>
    %c2_152 = arith.constant 2 : index
    %c6_153 = arith.constant 6 : index
    %308 = memref.load %arg4[%c2_152, %c6_153] : memref<7x7xf32, #tpu.memory_space<smem>>
    %309 = vector.broadcast %308 : f32 to vector<8x128xf32>
    %310 = arith.mulf %309, %53 : vector<8x128xf32>
    %311 = arith.addf %307, %310 : vector<8x128xf32>
    %c3_154 = arith.constant 3 : index
    %c6_155 = arith.constant 6 : index
    %312 = memref.load %arg4[%c3_154, %c6_155] : memref<7x7xf32, #tpu.memory_space<smem>>
    %313 = vector.broadcast %312 : f32 to vector<8x128xf32>
    %314 = arith.mulf %313, %69 : vector<8x128xf32>
    %315 = arith.addf %311, %314 : vector<8x128xf32>
    %c4_156 = arith.constant 4 : index
    %c6_157 = arith.constant 6 : index
    %316 = memref.load %arg4[%c4_156, %c6_157] : memref<7x7xf32, #tpu.memory_space<smem>>
    %317 = vector.broadcast %316 : f32 to vector<8x128xf32>
    %318 = arith.mulf %317, %85 : vector<8x128xf32>
    %319 = arith.addf %315, %318 : vector<8x128xf32>
    %c5_158 = arith.constant 5 : index
    %c6_159 = arith.constant 6 : index
    %320 = memref.load %arg4[%c5_158, %c6_159] : memref<7x7xf32, #tpu.memory_space<smem>>
    %321 = vector.broadcast %320 : f32 to vector<8x128xf32>
    %322 = arith.mulf %321, %101 : vector<8x128xf32>
    %323 = arith.addf %319, %322 : vector<8x128xf32>
    %c6_160 = arith.constant 6 : index
    %c6_161 = arith.constant 6 : index
    %324 = memref.load %arg4[%c6_160, %c6_161] : memref<7x7xf32, #tpu.memory_space<smem>>
    %325 = vector.broadcast %324 : f32 to vector<8x128xf32>
    %326 = arith.mulf %325, %117 : vector<8x128xf32>
    %327 = arith.addf %323, %326 : vector<8x128xf32>
    %c0_162 = arith.constant 0 : index
    %328 = memref.load %arg7[%c0_162] : memref<3xf32, #tpu.memory_space<smem>>
    %c0_163 = arith.constant 0 : index
    %c0_164 = arith.constant 0 : index
    %329 = memref.load %arg6[%c0_163, %c0_164] : memref<7x3xf32, #tpu.memory_space<smem>>
    %330 = vector.broadcast %329 : f32 to vector<8x128xf32>
    %331 = arith.mulf %330, %147 : vector<8x128xf32>
    %332 = vector.broadcast %328 : f32 to vector<8x128xf32>
    %333 = arith.addf %332, %331 : vector<8x128xf32>
    %c1_165 = arith.constant 1 : index
    %c0_166 = arith.constant 0 : index
    %334 = memref.load %arg6[%c1_165, %c0_166] : memref<7x3xf32, #tpu.memory_space<smem>>
    %335 = vector.broadcast %334 : f32 to vector<8x128xf32>
    %336 = arith.mulf %335, %177 : vector<8x128xf32>
    %337 = arith.addf %333, %336 : vector<8x128xf32>
    %c2_167 = arith.constant 2 : index
    %c0_168 = arith.constant 0 : index
    %338 = memref.load %arg6[%c2_167, %c0_168] : memref<7x3xf32, #tpu.memory_space<smem>>
    %339 = vector.broadcast %338 : f32 to vector<8x128xf32>
    %340 = arith.mulf %339, %207 : vector<8x128xf32>
    %341 = arith.addf %337, %340 : vector<8x128xf32>
    %c3_169 = arith.constant 3 : index
    %c0_170 = arith.constant 0 : index
    %342 = memref.load %arg6[%c3_169, %c0_170] : memref<7x3xf32, #tpu.memory_space<smem>>
    %343 = vector.broadcast %342 : f32 to vector<8x128xf32>
    %344 = arith.mulf %343, %237 : vector<8x128xf32>
    %345 = arith.addf %341, %344 : vector<8x128xf32>
    %c4_171 = arith.constant 4 : index
    %c0_172 = arith.constant 0 : index
    %346 = memref.load %arg6[%c4_171, %c0_172] : memref<7x3xf32, #tpu.memory_space<smem>>
    %347 = vector.broadcast %346 : f32 to vector<8x128xf32>
    %348 = arith.mulf %347, %267 : vector<8x128xf32>
    %349 = arith.addf %345, %348 : vector<8x128xf32>
    %c5_173 = arith.constant 5 : index
    %c0_174 = arith.constant 0 : index
    %350 = memref.load %arg6[%c5_173, %c0_174] : memref<7x3xf32, #tpu.memory_space<smem>>
    %351 = vector.broadcast %350 : f32 to vector<8x128xf32>
    %352 = arith.mulf %351, %297 : vector<8x128xf32>
    %353 = arith.addf %349, %352 : vector<8x128xf32>
    %c6_175 = arith.constant 6 : index
    %c0_176 = arith.constant 0 : index
    %354 = memref.load %arg6[%c6_175, %c0_176] : memref<7x3xf32, #tpu.memory_space<smem>>
    %355 = vector.broadcast %354 : f32 to vector<8x128xf32>
    %356 = arith.mulf %355, %327 : vector<8x128xf32>
    %357 = arith.addf %353, %356 : vector<8x128xf32>
    %c0_177 = arith.constant 0 : index
    %c0_178 = arith.constant 0 : index
    %c0_179 = arith.constant 0 : index
    %358 = vector.load %arg8[%c0_177, %c0_178, %c0_179] : memref<3x8x128xf32, #tpu.memory_space<vmem>>, vector<1x8x128xf32>
    %359 = vector.shape_cast %358 : vector<1x8x128xf32> to vector<8x128xf32>
    %360 = vector.shape_cast %357 : vector<8x128xf32> to vector<1x8x128xf32>
    tpu.vector_store %arg8[%c0_177, %c0_178, %c0_179], %360 {strides = array<i32>} : memref<3x8x128xf32, #tpu.memory_space<vmem>>, vector<1x8x128xf32>,
    %c1_180 = arith.constant 1 : index
    %361 = memref.load %arg7[%c1_180] : memref<3xf32, #tpu.memory_space<smem>>
    %c0_181 = arith.constant 0 : index
    %c1_182 = arith.constant 1 : index
    %362 = memref.load %arg6[%c0_181, %c1_182] : memref<7x3xf32, #tpu.memory_space<smem>>
    %363 = vector.broadcast %362 : f32 to vector<8x128xf32>
    %364 = arith.mulf %363, %147 : vector<8x128xf32>
    %365 = vector.broadcast %361 : f32 to vector<8x128xf32>
    %366 = arith.addf %365, %364 : vector<8x128xf32>
    %c1_183 = arith.constant 1 : index
    %c1_184 = arith.constant 1 : index
    %367 = memref.load %arg6[%c1_183, %c1_184] : memref<7x3xf32, #tpu.memory_space<smem>>
    %368 = vector.broadcast %367 : f32 to vector<8x128xf32>
    %369 = arith.mulf %368, %177 : vector<8x128xf32>
    %370 = arith.addf %366, %369 : vector<8x128xf32>
    %c2_185 = arith.constant 2 : index
    %c1_186 = arith.constant 1 : index
    %371 = memref.load %arg6[%c2_185, %c1_186] : memref<7x3xf32, #tpu.memory_space<smem>>
    %372 = vector.broadcast %371 : f32 to vector<8x128xf32>
    %373 = arith.mulf %372, %207 : vector<8x128xf32>
    %374 = arith.addf %370, %373 : vector<8x128xf32>
    %c3_187 = arith.constant 3 : index
    %c1_188 = arith.constant 1 : index
    %375 = memref.load %arg6[%c3_187, %c1_188] : memref<7x3xf32, #tpu.memory_space<smem>>
    %376 = vector.broadcast %375 : f32 to vector<8x128xf32>
    %377 = arith.mulf %376, %237 : vector<8x128xf32>
    %378 = arith.addf %374, %377 : vector<8x128xf32>
    %c4_189 = arith.constant 4 : index
    %c1_190 = arith.constant 1 : index
    %379 = memref.load %arg6[%c4_189, %c1_190] : memref<7x3xf32, #tpu.memory_space<smem>>
    %380 = vector.broadcast %379 : f32 to vector<8x128xf32>
    %381 = arith.mulf %380, %267 : vector<8x128xf32>
    %382 = arith.addf %378, %381 : vector<8x128xf32>
    %c5_191 = arith.constant 5 : index
    %c1_192 = arith.constant 1 : index
    %383 = memref.load %arg6[%c5_191, %c1_192] : memref<7x3xf32, #tpu.memory_space<smem>>
    %384 = vector.broadcast %383 : f32 to vector<8x128xf32>
    %385 = arith.mulf %384, %297 : vector<8x128xf32>
    %386 = arith.addf %382, %385 : vector<8x128xf32>
    %c6_193 = arith.constant 6 : index
    %c1_194 = arith.constant 1 : index
    %387 = memref.load %arg6[%c6_193, %c1_194] : memref<7x3xf32, #tpu.memory_space<smem>>
    %388 = vector.broadcast %387 : f32 to vector<8x128xf32>
    %389 = arith.mulf %388, %327 : vector<8x128xf32>
    %390 = arith.addf %386, %389 : vector<8x128xf32>
    %c1_195 = arith.constant 1 : index
    %c0_196 = arith.constant 0 : index
    %c0_197 = arith.constant 0 : index
    %391 = vector.load %arg8[%c1_195, %c0_196, %c0_197] : memref<3x8x128xf32, #tpu.memory_space<vmem>>, vector<1x8x128xf32>
    %392 = vector.shape_cast %391 : vector<1x8x128xf32> to vector<8x128xf32>
    %393 = vector.shape_cast %390 : vector<8x128xf32> to vector<1x8x128xf32>
    tpu.vector_store %arg8[%c1_195, %c0_196, %c0_197], %393 {strides = array<i32>} : memref<3x8x128xf32, #tpu.memory_space<vmem>>, vector<1x8x128xf32>,
    %c2_198 = arith.constant 2 : index
    %394 = memref.load %arg7[%c2_198] : memref<3xf32, #tpu.memory_space<smem>>
    %c0_199 = arith.constant 0 : index
    %c2_200 = arith.constant 2 : index
    %395 = memref.load %arg6[%c0_199, %c2_200] : memref<7x3xf32, #tpu.memory_space<smem>>
    %396 = vector.broadcast %395 : f32 to vector<8x128xf32>
    %397 = arith.mulf %396, %147 : vector<8x128xf32>
    %398 = vector.broadcast %394 : f32 to vector<8x128xf32>
    %399 = arith.addf %398, %397 : vector<8x128xf32>
    %c1_201 = arith.constant 1 : index
    %c2_202 = arith.constant 2 : index
    %400 = memref.load %arg6[%c1_201, %c2_202] : memref<7x3xf32, #tpu.memory_space<smem>>
    %401 = vector.broadcast %400 : f32 to vector<8x128xf32>
    %402 = arith.mulf %401, %177 : vector<8x128xf32>
    %403 = arith.addf %399, %402 : vector<8x128xf32>
    %c2_203 = arith.constant 2 : index
    %c2_204 = arith.constant 2 : index
    %404 = memref.load %arg6[%c2_203, %c2_204] : memref<7x3xf32, #tpu.memory_space<smem>>
    %405 = vector.broadcast %404 : f32 to vector<8x128xf32>
    %406 = arith.mulf %405, %207 : vector<8x128xf32>
    %407 = arith.addf %403, %406 : vector<8x128xf32>
    %c3_205 = arith.constant 3 : index
    %c2_206 = arith.constant 2 : index
    %408 = memref.load %arg6[%c3_205, %c2_206] : memref<7x3xf32, #tpu.memory_space<smem>>
    %409 = vector.broadcast %408 : f32 to vector<8x128xf32>
    %410 = arith.mulf %409, %237 : vector<8x128xf32>
    %411 = arith.addf %407, %410 : vector<8x128xf32>
    %c4_207 = arith.constant 4 : index
    %c2_208 = arith.constant 2 : index
    %412 = memref.load %arg6[%c4_207, %c2_208] : memref<7x3xf32, #tpu.memory_space<smem>>
    %413 = vector.broadcast %412 : f32 to vector<8x128xf32>
    %414 = arith.mulf %413, %267 : vector<8x128xf32>
    %415 = arith.addf %411, %414 : vector<8x128xf32>
    %c5_209 = arith.constant 5 : index
    %c2_210 = arith.constant 2 : index
    %416 = memref.load %arg6[%c5_209, %c2_210] : memref<7x3xf32, #tpu.memory_space<smem>>
    %417 = vector.broadcast %416 : f32 to vector<8x128xf32>
    %418 = arith.mulf %417, %297 : vector<8x128xf32>
    %419 = arith.addf %415, %418 : vector<8x128xf32>
    %c6_211 = arith.constant 6 : index
    %c2_212 = arith.constant 2 : index
    %420 = memref.load %arg6[%c6_211, %c2_212] : memref<7x3xf32, #tpu.memory_space<smem>>
    %421 = vector.broadcast %420 : f32 to vector<8x128xf32>
    %422 = arith.mulf %421, %327 : vector<8x128xf32>
    %423 = arith.addf %419, %422 : vector<8x128xf32>
    %c2_213 = arith.constant 2 : index
    %c0_214 = arith.constant 0 : index
    %c0_215 = arith.constant 0 : index
    %424 = vector.load %arg8[%c2_213, %c0_214, %c0_215] : memref<3x8x128xf32, #tpu.memory_space<vmem>>, vector<1x8x128xf32>
    %425 = vector.shape_cast %424 : vector<1x8x128xf32> to vector<8x128xf32>
    %426 = vector.shape_cast %423 : vector<8x128xf32> to vector<1x8x128xf32>
    tpu.vector_store %arg8[%c2_213, %c0_214, %c0_215], %426 {strides = array<i32>} : memref<3x8x128xf32, #tpu.memory_space<vmem>>, vector<1x8x128xf32>,
    return
  }
  func.func @transform_0(%arg0: i32) -> (i32, i32, i32) {
    %c0_i32 = arith.constant 0 : i32
    %c0_i32_0 = arith.constant 0 : i32
    %c0_i32_1 = arith.constant 0 : i32
    return %c0_i32, %arg0, %c0_i32_0 : i32, i32, i32
  }
  func.func @transform_1(%arg0: i32) -> (i32, i32) {
    %c0_i32 = arith.constant 0 : i32
    %c0_i32_0 = arith.constant 0 : i32
    %c0_i32_1 = arith.constant 0 : i32
    return %c0_i32, %c0_i32_0 : i32, i32
  }
  func.func @transform_2(%arg0: i32) -> i32 {
    %c0_i32 = arith.constant 0 : i32
    %c0_i32_0 = arith.constant 0 : i32
    return %c0_i32 : i32
  }
  func.func @transform_3(%arg0: i32) -> (i32, i32) {
    %c0_i32 = arith.constant 0 : i32
    %c0_i32_0 = arith.constant 0 : i32
    %c0_i32_1 = arith.constant 0 : i32
    return %c0_i32, %c0_i32_0 : i32, i32
  }
  func.func @transform_4(%arg0: i32) -> i32 {
    %c0_i32 = arith.constant 0 : i32
    %c0_i32_0 = arith.constant 0 : i32
    return %c0_i32 : i32
  }
  func.func @transform_5(%arg0: i32) -> (i32, i32) {
    %c0_i32 = arith.constant 0 : i32
    %c0_i32_0 = arith.constant 0 : i32
    %c0_i32_1 = arith.constant 0 : i32
    return %c0_i32, %c0_i32_0 : i32, i32
  }
  func.func @transform_6(%arg0: i32) -> i32 {
    %c0_i32 = arith.constant 0 : i32
    %c0_i32_0 = arith.constant 0 : i32
    return %c0_i32 : i32
  }
  func.func @transform_7(%arg0: i32) -> (i32, i32, i32) {
    %c0_i32 = arith.constant 0 : i32
    %c0_i32_0 = arith.constant 0 : i32
    %c0_i32_1 = arith.constant 0 : i32
    return %c0_i32, %arg0, %c0_i32_0 : i32, i32, i32
  }
}

</mosaic_0001>

<llo_original>
// kernel: tpu_custom_call.1
$region0: #{tpu_custom_call.1}
  #allocation0 [shape = 'u32[]', space=smem, size = 0x4, offset = 0x4, fixed_abs, tag = 'smem constant byte address 0x4 - core index']
  #allocation1 [shape = 'u32[72,128]{1,0:T(1,128)}', space=vmem, size = 0x9000, scoped, tag = 'internal scratch']
  %s0 = inlined_call_operand.hbm [shape: f32[3,24,128], index: 0, kind: input, shape index: {}]
  %s1 = inlined_call_operand.vmem [shape: f32[3,7], index: 1, kind: input, shape index: {}]
  %s2 = inlined_call_operand.hbm [shape: f32[7], index: 2, kind: input, shape index: {}]
  %s3 = inlined_call_operand.vmem [shape: f32[7,7], index: 3, kind: input, shape index: {}]
  %s4 = inlined_call_operand.hbm [shape: f32[7], index: 4, kind: input, shape index: {}]
  %s5 = inlined_call_operand.vmem [shape: f32[7,3], index: 5, kind: input, shape index: {}]
  %s6 = inlined_call_operand.vmem [shape: f32[3], index: 6, kind: input, shape index: {}]
  %s7 = inlined_call_operand.hbm [shape: f32[3,24,128], index: 7, kind: output, shape index: {}]
  %s8 = sld [smem:[#allocation0]]
  $region89: #{tpu_custom_call.1} parent=0
    _
  %s10 = ssub.s32 1, %s8
  %s11 = scalar_select 0, %s10, %s8
  $region1: #{tpu_custom_call.1} parent=0
    #allocation2 [shape = 'u8[24576]{0}', space=vmem, size = 0x6000, scoped, tag = 'input window, operand 0']
    #allocation3 [shape = 's32[2]{0}', space=sflag, size = 0x8, scoped, tag = 'scoped memory for tpu_custom_call.1']
    #allocation4 [shape = 's32[2]{0}', space=sflag, size = 0x8, scoped, tag = 'scoped memory for tpu_custom_call.1']
    #allocation5 [shape = 's32[2]{0}', space=sflag, size = 0x8, scoped, tag = 'scoped memory for tpu_custom_call.1']
    #allocation6 [shape = 's32[2]{0}', space=sflag, size = 0x8, scoped, tag = 'scoped memory for tpu_custom_call.1']
    #allocation7 [shape = 'u8[2048]{0}', space=smem, size = 0x800, scoped, tag = 'input window, operand 1, single buffered']
    #allocation8 [shape = 'u8[512]{0}', space=smem, size = 0x200, scoped, tag = 'input window, operand 2, single buffered']
    #allocation9 [shape = 'u8[4096]{0}', space=smem, size = 0x1000, scoped, tag = 'input window, operand 3, single buffered']
    #allocation10 [shape = 's32[1]{0}', space=sflag, size = 0x4, scoped, tag = 'scoped memory for tpu_custom_call.1']
    #allocation11 [shape = 'u8[512]{0}', space=smem, size = 0x200, scoped, tag = 'input window, operand 4, single buffered']
    #allocation12 [shape = 's32[1]{0}', space=sflag, size = 0x4, scoped, tag = 'scoped memory for tpu_custom_call.1']
    #allocation13 [shape = 'u8[4096]{0}', space=smem, size = 0x1000, scoped, tag = 'input window, operand 5, single buffered']
    #allocation14 [shape = 'u8[512]{0}', space=smem, size = 0x200, scoped, tag = 'input window, operand 6, single buffered']
    #allocation15 [shape = 's32[1]{0}', space=sflag, size = 0x4, scoped, tag = 'scoped memory for tpu_custom_call.1']
    #allocation16 [shape = 'u8[24576]{0}', space=vmem, size = 0x6000, scoped, tag = 'output window, operand 0']
    %12 = vsyncpa [#allocation3], 0
    %s13 = scalar_lea.sflag [#allocation3], 1
    %14 = vsyncpa %s13, 0
    %15 = vsyncpa [#allocation6], 0
    %16 = vsyncpa [#allocation5], 0
    %17 = vsyncpa [#allocation10], 0
    %18 = vsyncpa [#allocation12], 0
    %19 = vsyncpa [#allocation15], 0
    %20 = vsyncpa [#allocation4], 0
    %s21 = scalar_lea.sflag [#allocation4], 1
    %22 = vsyncpa %s21, 0
    loop: start=0, step=1, limit=5
    $region2: #{tpu_custom_call.1} parent=1 // loop_pre_header
      _
    $region3: #{tpu_custom_call.1} parent=1 // loop_header
      %s24 = sphi 0, %s28
      %p25 = scmp.ge.s32.totalorder %s24, 5
      %s34 = sphi 0, %s36
      %s37 = sphi 0, %s34
      %s38 = sphi 0, %s37
      %s54 = sphi 0, %s38
      %s58 = sphi 0, %s58
      %s60 = sphi 0, %s58
      %s61 = sphi 0, %s60
      %s75 = sphi 0, %s61
      %s79 = sphi 0, %s79
      %s81 = sphi 0, %s79
      %s82 = sphi 0, %s81
      %s96 = sphi 0, %s82
      %s100 = sphi 0, %s100
      %s102 = sphi 0, %s100
      %s103 = sphi 0, %s102
      %s117 = sphi 0, %s103
      %s121 = sphi 0, %s121
      %s123 = sphi 0, %s121
      %s124 = sphi 0, %s123
      %s138 = sphi 0, %s124
      %s142 = sphi 0, %s142
      %s144 = sphi 0, %s142
      %s145 = sphi 0, %s144
      %s159 = sphi 0, %s145
      %s163 = sphi 0, %s163
      %s165 = sphi 0, %s163
      %s166 = sphi 0, %s165
      %s180 = sphi 0, %s166
      %s186 = sphi 0, %s188
      %s189 = sphi 0, %s186
      %s190 = sphi 0, %s189
      %s206 = sphi 0, %s190
    $region4: #{tpu_custom_call.1} parent=1 // loop_header_branch
      %27 = sbr.rel (%p25) target = $region8
    $region5: #{tpu_custom_call.1} parent=1 // loop_body
      %s29 = ssub.s32 %s24, 1
      %s30 = ssub.s32 %s24, 2
      %s31 = sadd.s32 %s24, 1
      %s32 = ssub.s32 %s24, %s31
      %p33 = scmp.eq.s32.totalorder %s32, 0
      %s35 = sadd.s32 %s34, 1
      %s36 = scalar_select %p33, %s34, %s35
      %p39 = pneg %p33
      %p40 = scmp.eq.s32.totalorder %s24, 2
      %p41 = por %p39, %p40
      %p42 = scmp.ne.s32.totalorder %s34, %s37
      %p43 = scmp.eq.s32.totalorder %s24, 0
      %p44 = por %p42, %p43
      %p45 = scmp.ne.s32.totalorder %s34, %s37
      %p46 = scmp.eq.s32.totalorder %s29, 2
      %p47 = por %p45, %p46
      %p48 = scmp.ne.s32.totalorder %s37, %s38
      %p49 = scmp.eq.s32.totalorder %s29, 0
      %p50 = por %p48, %p49
      %p51 = scmp.ne.s32.totalorder %s37, %s38
      %p52 = scmp.eq.s32.totalorder %s30, 2
      %p53 = por %p51, %p52
      %p55 = scmp.ne.s32.totalorder %s38, %s54
      %p56 = scmp.eq.s32.totalorder %s30, 0
      %p57 = por %p55, %p56
      %s59 = sadd.s32 %s58, 1
      %p62 = scmp.eq.s32.totalorder %s24, 2
      %p63 = scmp.ne.s32.totalorder %s58, %s60
      %p64 = scmp.eq.s32.totalorder %s24, 0
      %p65 = por %p63, %p64
      %p66 = scmp.ne.s32.totalorder %s58, %s60
      %p67 = scmp.eq.s32.totalorder %s29, 2
      %p68 = por %p66, %p67
      %p69 = scmp.ne.s32.totalorder %s60, %s61
      %p70 = scmp.eq.s32.totalorder %s29, 0
      %p71 = por %p69, %p70
      %p72 = scmp.ne.s32.totalorder %s60, %s61
      %p73 = scmp.eq.s32.totalorder %s30, 2
      %p74 = por %p72, %p73
      %p76 = scmp.ne.s32.totalorder %s61, %s75
      %p77 = scmp.eq.s32.totalorder %s30, 0
      %p78 = por %p76, %p77
      %s80 = sadd.s32 %s79, 1
      %p83 = scmp.eq.s32.totalorder %s24, 2
      %p84 = scmp.ne.s32.totalorder %s79, %s81
      %p85 = scmp.eq.s32.totalorder %s24, 0
      %p86 = por %p84, %p85
      %p87 = scmp.ne.s32.totalorder %s79, %s81
      %p88 = scmp.eq.s32.totalorder %s29, 2
      %p89 = por %p87, %p88
      %p90 = scmp.ne.s32.totalorder %s81, %s82
      %p91 = scmp.eq.s32.totalorder %s29, 0
      %p92 = por %p90, %p91
      %p93 = scmp.ne.s32.totalorder %s81, %s82
      %p94 = scmp.eq.s32.totalorder %s30, 2
      %p95 = por %p93, %p94
      %p97 = scmp.ne.s32.totalorder %s82, %s96
      %p98 = scmp.eq.s32.totalorder %s30, 0
      %p99 = por %p97, %p98
      %s101 = sadd.s32 %s100, 1
      %p104 = scmp.eq.s32.totalorder %s24, 2
      %p105 = scmp.ne.s32.totalorder %s100, %s102
      %p106 = scmp.eq.s32.totalorder %s24, 0
      %p107 = por %p105, %p106
      %p108 = scmp.ne.s32.totalorder %s100, %s102
      %p109 = scmp.eq.s32.totalorder %s29, 2
      %p110 = por %p108, %p109
      %p111 = scmp.ne.s32.totalorder %s102, %s103
      %p112 = scmp.eq.s32.totalorder %s29, 0
      %p113 = por %p111, %p112
      %p114 = scmp.ne.s32.totalorder %s102, %s103
      %p115 = scmp.eq.s32.totalorder %s30, 2
      %p116 = por %p114, %p115
      %p118 = scmp.ne.s32.totalorder %s103, %s117
      %p119 = scmp.eq.s32.totalorder %s30, 0
      %p120 = por %p118, %p119
      %s122 = sadd.s32 %s121, 1
      %p125 = scmp.eq.s32.totalorder %s24, 2
      %p126 = scmp.ne.s32.totalorder %s121, %s123
      %p127 = scmp.eq.s32.totalorder %s24, 0
      %p128 = por %p126, %p127
      %p129 = scmp.ne.s32.totalorder %s121, %s123
      %p130 = scmp.eq.s32.totalorder %s29, 2
      %p131 = por %p129, %p130
      %p132 = scmp.ne.s32.totalorder %s123, %s124
      %p133 = scmp.eq.s32.totalorder %s29, 0
      %p134 = por %p132, %p133
      %p135 = scmp.ne.s32.totalorder %s123, %s124
      %p136 = scmp.eq.s32.totalorder %s30, 2
      %p137 = por %p135, %p136
      %p139 = scmp.ne.s32.totalorder %s124, %s138
      %p140 = scmp.eq.s32.totalorder %s30, 0
      %p141 = por %p139, %p140
      %s143 = sadd.s32 %s142, 1
      %p146 = scmp.eq.s32.totalorder %s24, 2
      %p147 = scmp.ne.s32.totalorder %s142, %s144
      %p148 = scmp.eq.s32.totalorder %s24, 0
      %p149 = por %p147, %p148
      %p150 = scmp.ne.s32.totalorder %s142, %s144
      %p151 = scmp.eq.s32.totalorder %s29, 2
      %p152 = por %p150, %p151
      %p153 = scmp.ne.s32.totalorder %s144, %s145
      %p154 = scmp.eq.s32.totalorder %s29, 0
      %p155 = por %p153, %p154
      %p156 = scmp.ne.s32.totalorder %s144, %s145
      %p157 = scmp.eq.s32.totalorder %s30, 2
      %p158 = por %p156, %p157
      %p160 = scmp.ne.s32.totalorder %s145, %s159
      %p161 = scmp.eq.s32.totalorder %s30, 0
      %p162 = por %p160, %p161
      %s164 = sadd.s32 %s163, 1
      %p167 = scmp.eq.s32.totalorder %s24, 2
      %p168 = scmp.ne.s32.totalorder %s163, %s165
      %p169 = scmp.eq.s32.totalorder %s24, 0
      %p170 = por %p168, %p169
      %p171 = scmp.ne.s32.totalorder %s163, %s165
      %p172 = scmp.eq.s32.totalorder %s29, 2
      %p173 = por %p171, %p172
      %p174 = scmp.ne.s32.totalorder %s165, %s166
      %p175 = scmp.eq.s32.totalorder %s29, 0
      %p176 = por %p174, %p175
      %p177 = scmp.ne.s32.totalorder %s165, %s166
      %p178 = scmp.eq.s32.totalorder %s30, 2
      %p179 = por %p177, %p178
      %p181 = scmp.ne.s32.totalorder %s166, %s180
      %p182 = scmp.eq.s32.totalorder %s30, 0
      %p183 = por %p181, %p182
      %s184 = ssub.s32 %s24, %s31
      %p185 = scmp.eq.s32.totalorder %s184, 0
      %s187 = sadd.s32 %s186, 1
      %s188 = scalar_select %p185, %s186, %s187
      %p191 = pneg %p185
      %p192 = scmp.eq.s32.totalorder %s24, 2
      %p193 = por %p191, %p192
      %p194 = scmp.ne.s32.totalorder %s186, %s189
      %p195 = scmp.eq.s32.totalorder %s24, 0
      %p196 = por %p194, %p195
      %p197 = scmp.ne.s32.totalorder %s186, %s189
      %p198 = scmp.eq.s32.totalorder %s29, 2
      %p199 = por %p197, %p198
      %p200 = scmp.ne.s32.totalorder %s189, %s190
      %p201 = scmp.eq.s32.totalorder %s29, 0
      %p202 = por %p200, %p201
      %p203 = scmp.ne.s32.totalorder %s189, %s190
      %p204 = scmp.eq.s32.totalorder %s30, 2
      %p205 = por %p203, %p204
      %p207 = scmp.ne.s32.totalorder %s190, %s206
      %p208 = scmp.eq.s32.totalorder %s30, 0
      %p209 = por %p207, %p208
      %p210 = scmp.le.s32.totalorder 1, %s24
      %p211 = scmp.lt.s32.totalorder %s24, 4
      %p212 = pnand %p210, %p211
      %p213 = pneg %p212
      // Predicated region
      $region9: #{tpu_custom_call.1} parent=5 // pred_check
        _
      $region10: #{tpu_custom_call.1} parent=5 // pred_check_branch
        %215 = sbr.rel (%p212) target = $region12
      $region11: #{tpu_custom_call.1} parent=5 // pred_region
        %s216 = ssub.s32 %s24, 1
        // Predicated region
        $region13: #{tpu_custom_call.1} parent=11 // pred_check
          %p217 = pneg %p71
        $region14: #{tpu_custom_call.1} parent=11 // pred_check_branch
          %219 = sbr.rel (%p217) target = $region16
        $region15: #{tpu_custom_call.1} parent=11 // pred_region
          %221 = vsyncadd [#allocation6], 0
          %s223 = sshll.u32 %s1, 4
          %s224 = int_to_ptr.vmem [resolvable:$true] %s223
          %226 = dma.vmem_to_smem %s224, 64, [#allocation7], [#allocation6]
        $region16: #{tpu_custom_call.1} parent=11 // pred_fallthru
          _
        // Predicated region
        $region17: #{tpu_custom_call.1} parent=11 // pred_check
          %p227 = pneg %p92
        $region18: #{tpu_custom_call.1} parent=11 // pred_check_branch
          %229 = sbr.rel (%p227) target = $region20
        $region19: #{tpu_custom_call.1} parent=11 // pred_region
          %231 = vsyncadd [#allocation5], 0
          %s233 = sshll.u32 %s2, 4
          %s234 = int_to_ptr.hbm [resolvable:$true] %s233
          %236 = dma.hbm_to_smem %s234, 16, [#allocation8], [#allocation5]
        $region20: #{tpu_custom_call.1} parent=11 // pred_fallthru
          _
        // Predicated region
        $region21: #{tpu_custom_call.1} parent=11 // pred_check
          %p237 = pneg %p113
        $region22: #{tpu_custom_call.1} parent=11 // pred_check_branch
          %239 = sbr.rel (%p237) target = $region24
        $region23: #{tpu_custom_call.1} parent=11 // pred_region
          %241 = vsyncadd [#allocation10], 0
          %s243 = sshll.u32 %s3, 4
          %s244 = int_to_ptr.vmem [resolvable:$true] %s243
          %246 = dma.vmem_to_smem %s244, 128, [#allocation9], [#allocation10]
        $region24: #{tpu_custom_call.1} parent=11 // pred_fallthru
          _
        // Predicated region
        $region25: #{tpu_custom_call.1} parent=11 // pred_check
          %p247 = pneg %p134
        $region26: #{tpu_custom_call.1} parent=11 // pred_check_branch
          %249 = sbr.rel (%p247) target = $region28
        $region27: #{tpu_custom_call.1} parent=11 // pred_region
          %251 = vsyncadd [#allocation12], 0
          %s253 = sshll.u32 %s4, 4
          %s254 = int_to_ptr.hbm [resolvable:$true] %s253
          %256 = dma.hbm_to_smem %s254, 16, [#allocation11], [#allocation12]
        $region28: #{tpu_custom_call.1} parent=11 // pred_fallthru
          _
        // Predicated region
        $region29: #{tpu_custom_call.1} parent=11 // pred_check
          %p257 = pneg %p155
        $region30: #{tpu_custom_call.1} parent=11 // pred_check_branch
          %259 = sbr.rel (%p257) target = $region32
        $region31: #{tpu_custom_call.1} parent=11 // pred_region
          %261 = vsyncadd [#allocation10], 0
          %s263 = sshll.u32 %s5, 4
          %s264 = int_to_ptr.vmem [resolvable:$true] %s263
          %266 = dma.vmem_to_smem %s264, 128, [#allocation13], [#allocation10]
        $region32: #{tpu_custom_call.1} parent=11 // pred_fallthru
          _
        // Predicated region
        $region33: #{tpu_custom_call.1} parent=11 // pred_check
          %p267 = pneg %p176
        $region34: #{tpu_custom_call.1} parent=11 // pred_check_branch
          %269 = sbr.rel (%p267) target = $region36
        $region35: #{tpu_custom_call.1} parent=11 // pred_region
          %271 = vsyncadd [#allocation15], 0
          %s273 = sshll.u32 %s6, 4
          %s274 = int_to_ptr.vmem [resolvable:$true] %s273
          %276 = dma.vmem_to_smem %s274, 16, [#allocation14], [#allocation15]
        $region36: #{tpu_custom_call.1} parent=11 // pred_fallthru
          _
      $region12: #{tpu_custom_call.1} parent=5 // pred_fallthru
        _
      %p277 = scmp.lt.s32.totalorder %s24, 3
      // Predicated region
      $region37: #{tpu_custom_call.1} parent=5 // pred_check
        %p278 = pneg %p277
      $region38: #{tpu_custom_call.1} parent=5 // pred_check_branch
        %280 = sbr.rel (%p278) target = $region40
      $region39: #{tpu_custom_call.1} parent=5 // pred_region
        // Predicated region
        $region41: #{tpu_custom_call.1} parent=39 // pred_check
          %p281 = pneg %p44
        $region42: #{tpu_custom_call.1} parent=39 // pred_check_branch
          %283 = sbr.rel (%p281) target = $region44
        $region43: #{tpu_custom_call.1} parent=39 // pred_region
          %s284 = sand.u32 %s34, 1
          %s285 = scalar_lea.sflag [#allocation3], %s284
          %s286 = sand.u32 %s34, 1
          %s287 = smul.addr %s286, 24
          %s288 = scalar_lea.vmem [#allocation2], %s287
          %290 = vsyncadd %s285, 0
          %s291 = smul.addr %s24, 8
          %s292 = scalar_lea.hbm %s0, %s291
          %s293 = sshll.u32 %s292, 4
          %s294 = int_to_ptr.hbm [resolvable:$true] %s293
          %s295 = sshll.u32 %s288, 4
          %s296 = int_to_ptr.vmem [resolvable:$true] %s295
          %301 = dma.hbm_to_vmem [thread:$0]  %s294, 384, %s296, %s285, 384, 128, 8
        $region44: #{tpu_custom_call.1} parent=39 // pred_fallthru
          _
      $region40: #{tpu_custom_call.1} parent=5 // pred_fallthru
        _
      %p302 = scmp.le.s32.totalorder 1, %s24
      %p303 = scmp.lt.s32.totalorder %s24, 4
      %p304 = pnand %p302, %p303
      %p305 = pneg %p304
      // Predicated region
      $region45: #{tpu_custom_call.1} parent=5 // pred_check
        _
      $region46: #{tpu_custom_call.1} parent=5 // pred_check_branch
        %307 = sbr.rel (%p304) target = $region48
      $region47: #{tpu_custom_call.1} parent=5 // pred_region
        %s308 = ssub.s32 %s24, 1
        %s309 = sand.u32 %s37, 1
        %s310 = scalar_lea.sflag [#allocation3], %s309
        %s311 = sand.u32 %s37, 1
        %s312 = smul.addr %s311, 24
        %s313 = scalar_lea.vmem [#allocation2], %s312
        // Predicated region
        $region49: #{tpu_custom_call.1} parent=47 // pred_check
          %p314 = pneg %p50
        $region50: #{tpu_custom_call.1} parent=47 // pred_check_branch
          %316 = sbr.rel (%p314) target = $region52
        $region51: #{tpu_custom_call.1} parent=47 // pred_region
          %318 = dma.done %s310, 384
        $region52: #{tpu_custom_call.1} parent=47 // pred_fallthru
          _
        // Predicated region
        $region53: #{tpu_custom_call.1} parent=47 // pred_check
          %p319 = pneg %p71
        $region54: #{tpu_custom_call.1} parent=47 // pred_check_branch
          %321 = sbr.rel (%p319) target = $region56
        $region55: #{tpu_custom_call.1} parent=47 // pred_region
          %323 = dma.done [#allocation6], 64
        $region56: #{tpu_custom_call.1} parent=47 // pred_fallthru
          _
        // Predicated region
        $region57: #{tpu_custom_call.1} parent=47 // pred_check
          %p324 = pneg %p92
        $region58: #{tpu_custom_call.1} parent=47 // pred_check_branch
          %326 = sbr.rel (%p324) target = $region60
        $region59: #{tpu_custom_call.1} parent=47 // pred_region
          %328 = dma.done [#allocation5], 16
        $region60: #{tpu_custom_call.1} parent=47 // pred_fallthru
          _
        // Predicated region
        $region61: #{tpu_custom_call.1} parent=47 // pred_check
          %p329 = pneg %p113
        $region62: #{tpu_custom_call.1} parent=47 // pred_check_branch
          %331 = sbr.rel (%p329) target = $region64
        $region63: #{tpu_custom_call.1} parent=47 // pred_region
          %333 = dma.done [#allocation10], 128
        $region64: #{tpu_custom_call.1} parent=47 // pred_fallthru
          _
        // Predicated region
        $region65: #{tpu_custom_call.1} parent=47 // pred_check
          %p334 = pneg %p134
        $region66: #{tpu_custom_call.1} parent=47 // pred_check_branch
          %336 = sbr.rel (%p334) target = $region68
        $region67: #{tpu_custom_call.1} parent=47 // pred_region
          %338 = dma.done [#allocation12], 16
        $region68: #{tpu_custom_call.1} parent=47 // pred_fallthru
          _
        // Predicated region
        $region69: #{tpu_custom_call.1} parent=47 // pred_check
          %p339 = pneg %p155
        $region70: #{tpu_custom_call.1} parent=47 // pred_check_branch
          %341 = sbr.rel (%p339) target = $region72
        $region71: #{tpu_custom_call.1} parent=47 // pred_region
          %343 = dma.done [#allocation10], 128
        $region72: #{tpu_custom_call.1} parent=47 // pred_fallthru
          _
        // Predicated region
        $region73: #{tpu_custom_call.1} parent=47 // pred_check
          %p344 = pneg %p176
        $region74: #{tpu_custom_call.1} parent=47 // pred_check_branch
          %346 = sbr.rel (%p344) target = $region76
        $region75: #{tpu_custom_call.1} parent=47 // pred_region
          %348 = dma.done [#allocation15], 16
        $region76: #{tpu_custom_call.1} parent=47 // pred_fallthru
          _
        %349 = sfence
        %s350 = sand.u32 %s37, 1
        %s351 = scalar_lea.sflag [#allocation3], %s350
        %s352 = sand.u32 %s37, 1
        %s353 = smul.addr %s352, 24
        %s354 = scalar_lea.vmem [#allocation2], %s353
        %p355 = pneg %p50
        %p356 = pneg %p47
        %p357 = pneg %p71
        %p358 = pneg %p68
        %p359 = pneg %p92
        %p360 = pneg %p89
        %p361 = pneg %p113
        %p362 = pneg %p110
        %p363 = pneg %p134
        %p364 = pneg %p131
        %p365 = pneg %p155
        %p366 = pneg %p152
        %p367 = pneg %p176
        %p368 = pneg %p173
        %p369 = pneg %p202
        %p370 = pneg %p199
        %s371 = sand.u32 %s189, 1
        %s372 = scalar_lea.sflag [#allocation4], %s371
        %s373 = sand.u32 %s189, 1
        %s374 = smul.addr %s373, 24
        %s375 = scalar_lea.vmem [#allocation16], %s374
        %v376 = vld [vmem:[%s313] sm:$0xff]
        %s377 = scalar_lea.vmem %s313, 8 [#allocation2]
        %v378 = vld [vmem:[%s377] sm:$0xff]
        %s379 = scalar_lea.vmem %s313, 16 [#allocation2]
        %v380 = vld [vmem:[%s379] sm:$0xff]
        %s381 = sld [smem:[#allocation8]]
        %s382 = sld [smem:[#allocation7]]
        %v383 = vstv %s382
        %v384 = vmul.f32 %v383, %v376
        %v385 = vstv %s381
        %v386 = vadd.f32 %v385, %v384
        %s387 = sld [smem:[#allocation7 + $0x80]]
        %v388 = vstv %s387
        %v389 = vmul.f32 %v388, %v378
        %v390 = vadd.f32 %v386, %v389
        %s391 = sld [smem:[#allocation7 + $0x100]]
        %v392 = vstv %s391
        %v393 = vmul.f32 %v392, %v380
        %v394 = vadd.f32 %v390, %v393
        %v395 = vmax.f32 %v394, 0.0
        %s396 = sld [smem:[#allocation8 + $0x1]]
        %s397 = sld [smem:[#allocation7 + $0x1]]
        %v398 = vstv %s397
        %v399 = vmul.f32 %v398, %v376
        %v400 = vstv %s396
        %v401 = vadd.f32 %v400, %v399
        %s402 = sld [smem:[#allocation7 + $0x81]]
        %v403 = vstv %s402
        %v404 = vmul.f32 %v403, %v378
        %v405 = vadd.f32 %v401, %v404
        %s406 = sld [smem:[#allocation7 + $0x101]]
        %v407 = vstv %s406
        %v408 = vmul.f32 %v407, %v380
        %v409 = vadd.f32 %v405, %v408
        %v410 = vmax.f32 %v409, 0.0
        %s411 = sld [smem:[#allocation8 + $0x2]]
        %s412 = sld [smem:[#allocation7 + $0x2]]
        %v413 = vstv %s412
        %v414 = vmul.f32 %v413, %v376
        %v415 = vstv %s411
        %v416 = vadd.f32 %v415, %v414
        %s417 = sld [smem:[#allocation7 + $0x82]]
        %v418 = vstv %s417
        %v419 = vmul.f32 %v418, %v378
        %v420 = vadd.f32 %v416, %v419
        %s421 = sld [smem:[#allocation7 + $0x102]]
        %v422 = vstv %s421
        %v423 = vmul.f32 %v422, %v380
        %v424 = vadd.f32 %v420, %v423
        %v425 = vmax.f32 %v424, 0.0
        %s426 = sld [smem:[#allocation8 + $0x3]]
        %s427 = sld [smem:[#allocation7 + $0x3]]
        %v428 = vstv %s427
        %v429 = vmul.f32 %v428, %v376
        %v430 = vstv %s426
        %v431 = vadd.f32 %v430, %v429
        %s432 = sld [smem:[#allocation7 + $0x83]]
        %v433 = vstv %s432
        %v434 = vmul.f32 %v433, %v378
        %v435 = vadd.f32 %v431, %v434
        %s436 = sld [smem:[#allocation7 + $0x103]]
        %v437 = vstv %s436
        %v438 = vmul.f32 %v437, %v380
        %v439 = vadd.f32 %v435, %v438
        %v440 = vmax.f32 %v439, 0.0
        %s441 = sld [smem:[#allocation8 + $0x4]]
        %s442 = sld [smem:[#allocation7 + $0x4]]
        %v443 = vstv %s442
        %v444 = vmul.f32 %v443, %v376
        %v445 = vstv %s441
        %v446 = vadd.f32 %v445, %v444
        %s447 = sld [smem:[#allocation7 + $0x84]]
        %v448 = vstv %s447
        %v449 = vmul.f32 %v448, %v378
        %v450 = vadd.f32 %v446, %v449
        %s451 = sld [smem:[#allocation7 + $0x104]]
        %v452 = vstv %s451
        %v453 = vmul.f32 %v452, %v380
        %v454 = vadd.f32 %v450, %v453
        %v455 = vmax.f32 %v454, 0.0
        %s456 = sld [smem:[#allocation8 + $0x5]]
        %s457 = sld [smem:[#allocation7 + $0x5]]
        %v458 = vstv %s457
        %v459 = vmul.f32 %v458, %v376
        %v460 = vstv %s456
        %v461 = vadd.f32 %v460, %v459
        %s462 = sld [smem:[#allocation7 + $0x85]]
        %v463 = vstv %s462
        %v464 = vmul.f32 %v463, %v378
        %v465 = vadd.f32 %v461, %v464
        %s466 = sld [smem:[#allocation7 + $0x105]]
        %v467 = vstv %s466
        %v468 = vmul.f32 %v467, %v380
        %v469 = vadd.f32 %v465, %v468
        %v470 = vmax.f32 %v469, 0.0
        %s471 = sld [smem:[#allocation8 + $0x6]]
        %s472 = sld [smem:[#allocation7 + $0x6]]
        %v473 = vstv %s472
        %v474 = vmul.f32 %v473, %v376
        %v475 = vstv %s471
        %v476 = vadd.f32 %v475, %v474
        %s477 = sld [smem:[#allocation7 + $0x86]]
        %v478 = vstv %s477
        %v479 = vmul.f32 %v478, %v378
        %v480 = vadd.f32 %v476, %v479
        %s481 = sld [smem:[#allocation7 + $0x106]]
        %v482 = vstv %s481
        %v483 = vmul.f32 %v482, %v380
        %v484 = vadd.f32 %v480, %v483
        %v485 = vmax.f32 %v484, 0.0
        %s486 = sld [smem:[#allocation11]]
        %s487 = sld [smem:[#allocation9]]
        %v488 = vstv %s487
        %v489 = vmul.f32 %v488, %v395
        %v490 = vstv %s486
        %v491 = vadd.f32 %v490, %v489
        %s492 = sld [smem:[#allocation9 + $0x80]]
        %v493 = vstv %s492
        %v494 = vmul.f32 %v493, %v410
        %v495 = vadd.f32 %v491, %v494
        %s496 = sld [smem:[#allocation9 + $0x100]]
        %v497 = vstv %s496
        %v498 = vmul.f32 %v497, %v425
        %v499 = vadd.f32 %v495, %v498
        %s500 = sld [smem:[#allocation9 + $0x180]]
        %v501 = vstv %s500
        %v502 = vmul.f32 %v501, %v440
        %v503 = vadd.f32 %v499, %v502
        %s504 = sld [smem:[#allocation9 + $0x200]]
        %v505 = vstv %s504
        %v506 = vmul.f32 %v505, %v455
        %v507 = vadd.f32 %v503, %v506
        %s508 = sld [smem:[#allocation9 + $0x280]]
        %v509 = vstv %s508
        %v510 = vmul.f32 %v509, %v470
        %v511 = vadd.f32 %v507, %v510
        %s512 = sld [smem:[#allocation9 + $0x300]]
        %v513 = vstv %s512
        %v514 = vmul.f32 %v513, %v485
        %v515 = vadd.f32 %v511, %v514
        %s516 = sld [smem:[#allocation11 + $0x1]]
        %s517 = sld [smem:[#allocation9 + $0x1]]
        %v518 = vstv %s517
        %v519 = vmul.f32 %v518, %v395
        %v520 = vstv %s516
        %v521 = vadd.f32 %v520, %v519
        %s522 = sld [smem:[#allocation9 + $0x81]]
        %v523 = vstv %s522
        %v524 = vmul.f32 %v523, %v410
        %v525 = vadd.f32 %v521, %v524
        %s526 = sld [smem:[#allocation9 + $0x101]]
        %v527 = vstv %s526
        %v528 = vmul.f32 %v527, %v425
        %v529 = vadd.f32 %v525, %v528
        %s530 = sld [smem:[#allocation9 + $0x181]]
        %v531 = vstv %s530
        %v532 = vmul.f32 %v531, %v440
        %v533 = vadd.f32 %v529, %v532
        %s534 = sld [smem:[#allocation9 + $0x201]]
        %v535 = vstv %s534
        %v536 = vmul.f32 %v535, %v455
        %v537 = vadd.f32 %v533, %v536
        %s538 = sld [smem:[#allocation9 + $0x281]]
        %v539 = vstv %s538
        %v540 = vmul.f32 %v539, %v470
        %v541 = vadd.f32 %v537, %v540
        %s542 = sld [smem:[#allocation9 + $0x301]]
        %v543 = vstv %s542
        %v544 = vmul.f32 %v543, %v485
        %v545 = vadd.f32 %v541, %v544
        %s546 = sld [smem:[#allocation11 + $0x2]]
        %s547 = sld [smem:[#allocation9 + $0x2]]
        %v548 = vstv %s547
        %v549 = vmul.f32 %v548, %v395
        %v550 = vstv %s546
        %v551 = vadd.f32 %v550, %v549
        %s552 = sld [smem:[#allocation9 + $0x82]]
        %v553 = vstv %s552
        %v554 = vmul.f32 %v553, %v410
        %v555 = vadd.f32 %v551, %v554
        %s556 = sld [smem:[#allocation9 + $0x102]]
        %v557 = vstv %s556
        %v558 = vmul.f32 %v557, %v425
        %v559 = vadd.f32 %v555, %v558
        %s560 = sld [smem:[#allocation9 + $0x182]]
        %v561 = vstv %s560
        %v562 = vmul.f32 %v561, %v440
        %v563 = vadd.f32 %v559, %v562
        %s564 = sld [smem:[#allocation9 + $0x202]]
        %v565 = vstv %s564
        %v566 = vmul.f32 %v565, %v455
        %v567 = vadd.f32 %v563, %v566
        %s568 = sld [smem:[#allocation9 + $0x282]]
        %v569 = vstv %s568
        %v570 = vmul.f32 %v569, %v470
        %v571 = vadd.f32 %v567, %v570
        %s572 = sld [smem:[#allocation9 + $0x302]]
        %v573 = vstv %s572
        %v574 = vmul.f32 %v573, %v485
        %v575 = vadd.f32 %v571, %v574
        %s576 = sld [smem:[#allocation11 + $0x3]]
        %s577 = sld [smem:[#allocation9 + $0x3]]
        %v578 = vstv %s577
        %v579 = vmul.f32 %v578, %v395
        %v580 = vstv %s576
        %v581 = vadd.f32 %v580, %v579
        %s582 = sld [smem:[#allocation9 + $0x83]]
        %v583 = vstv %s582
        %v584 = vmul.f32 %v583, %v410
        %v585 = vadd.f32 %v581, %v584
        %s586 = sld [smem:[#allocation9 + $0x103]]
        %v587 = vstv %s586
        %v588 = vmul.f32 %v587, %v425
        %v589 = vadd.f32 %v585, %v588
        %s590 = sld [smem:[#allocation9 + $0x183]]
        %v591 = vstv %s590
        %v592 = vmul.f32 %v591, %v440
        %v593 = vadd.f32 %v589, %v592
        %s594 = sld [smem:[#allocation9 + $0x203]]
        %v595 = vstv %s594
        %v596 = vmul.f32 %v595, %v455
        %v597 = vadd.f32 %v593, %v596
        %s598 = sld [smem:[#allocation9 + $0x283]]
        %v599 = vstv %s598
        %v600 = vmul.f32 %v599, %v470
        %v601 = vadd.f32 %v597, %v600
        %s602 = sld [smem:[#allocation9 + $0x303]]
        %v603 = vstv %s602
        %v604 = vmul.f32 %v603, %v485
        %v605 = vadd.f32 %v601, %v604
        %s606 = sld [smem:[#allocation11 + $0x4]]
        %s607 = sld [smem:[#allocation9 + $0x4]]
        %v608 = vstv %s607
        %v609 = vmul.f32 %v608, %v395
        %v610 = vstv %s606
        %v611 = vadd.f32 %v610, %v609
        %s612 = sld [smem:[#allocation9 + $0x84]]
        %v613 = vstv %s612
        %v614 = vmul.f32 %v613, %v410
        %v615 = vadd.f32 %v611, %v614
        %s616 = sld [smem:[#allocation9 + $0x104]]
        %v617 = vstv %s616
        %v618 = vmul.f32 %v617, %v425
        %v619 = vadd.f32 %v615, %v618
        %s620 = sld [smem:[#allocation9 + $0x184]]
        %v621 = vstv %s620
        %v622 = vmul.f32 %v621, %v440
        %v623 = vadd.f32 %v619, %v622
        %s624 = sld [smem:[#allocation9 + $0x204]]
        %v625 = vstv %s624
        %v626 = vmul.f32 %v625, %v455
        %v627 = vadd.f32 %v623, %v626
        %s628 = sld [smem:[#allocation9 + $0x284]]
        %v629 = vstv %s628
        %v630 = vmul.f32 %v629, %v470
        %v631 = vadd.f32 %v627, %v630
        %s632 = sld [smem:[#allocation9 + $0x304]]
        %v633 = vstv %s632
        %v634 = vmul.f32 %v633, %v485
        %v635 = vadd.f32 %v631, %v634
        %s636 = sld [smem:[#allocation11 + $0x5]]
        %s637 = sld [smem:[#allocation9 + $0x5]]
        %v638 = vstv %s637
        %v639 = vmul.f32 %v638, %v395
        %v640 = vstv %s636
        %v641 = vadd.f32 %v640, %v639
        %s642 = sld [smem:[#allocation9 + $0x85]]
        %v643 = vstv %s642
        %v644 = vmul.f32 %v643, %v410
        %v645 = vadd.f32 %v641, %v644
        %s646 = sld [smem:[#allocation9 + $0x105]]
        %v647 = vstv %s646
        %v648 = vmul.f32 %v647, %v425
        %v649 = vadd.f32 %v645, %v648
        %s650 = sld [smem:[#allocation9 + $0x185]]
        %v651 = vstv %s650
        %v652 = vmul.f32 %v651, %v440
        %v653 = vadd.f32 %v649, %v652
        %s654 = sld [smem:[#allocation9 + $0x205]]
        %v655 = vstv %s654
        %v656 = vmul.f32 %v655, %v455
        %v657 = vadd.f32 %v653, %v656
        %s658 = sld [smem:[#allocation9 + $0x285]]
        %v659 = vstv %s658
        %v660 = vmul.f32 %v659, %v470
        %v661 = vadd.f32 %v657, %v660
        %s662 = sld [smem:[#allocation9 + $0x305]]
        %v663 = vstv %s662
        %v664 = vmul.f32 %v663, %v485
        %v665 = vadd.f32 %v661, %v664
        %s666 = sld [smem:[#allocation11 + $0x6]]
        %s667 = sld [smem:[#allocation9 + $0x6]]
        %v668 = vstv %s667
        %v669 = vmul.f32 %v668, %v395
        %v670 = vstv %s666
        %v671 = vadd.f32 %v670, %v669
        %s672 = sld [smem:[#allocation9 + $0x86]]
        %v673 = vstv %s672
        %v674 = vmul.f32 %v673, %v410
        %v675 = vadd.f32 %v671, %v674
        %s676 = sld [smem:[#allocation9 + $0x106]]
        %v677 = vstv %s676
        %v678 = vmul.f32 %v677, %v425
        %v679 = vadd.f32 %v675, %v678
        %s680 = sld [smem:[#allocation9 + $0x186]]
        %v681 = vstv %s680
        %v682 = vmul.f32 %v681, %v440
        %v683 = vadd.f32 %v679, %v682
        %s684 = sld [smem:[#allocation9 + $0x206]]
        %v685 = vstv %s684
        %v686 = vmul.f32 %v685, %v455
        %v687 = vadd.f32 %v683, %v686
        %s688 = sld [smem:[#allocation9 + $0x286]]
        %v689 = vstv %s688
        %v690 = vmul.f32 %v689, %v470
        %v691 = vadd.f32 %v687, %v690
        %s692 = sld [smem:[#allocation9 + $0x306]]
        %v693 = vstv %s692
        %v694 = vmul.f32 %v693, %v485
        %v695 = vadd.f32 %v691, %v694
        %s696 = sld [smem:[#allocation14]]
        %s697 = sld [smem:[#allocation13]]
        %v698 = vstv %s697
        %v699 = vmul.f32 %v698, %v515
        %v700 = vstv %s696
        %v701 = vadd.f32 %v700, %v699
        %s702 = sld [smem:[#allocation13 + $0x80]]
        %v703 = vstv %s702
        %v704 = vmul.f32 %v703, %v545
        %v705 = vadd.f32 %v701, %v704
        %s706 = sld [smem:[#allocation13 + $0x100]]
        %v707 = vstv %s706
        %v708 = vmul.f32 %v707, %v575
        %v709 = vadd.f32 %v705, %v708
        %s710 = sld [smem:[#allocation13 + $0x180]]
        %v711 = vstv %s710
        %v712 = vmul.f32 %v711, %v605
        %v713 = vadd.f32 %v709, %v712
        %s714 = sld [smem:[#allocation13 + $0x200]]
        %v715 = vstv %s714
        %v716 = vmul.f32 %v715, %v635
        %v717 = vadd.f32 %v713, %v716
        %s718 = sld [smem:[#allocation13 + $0x280]]
        %v719 = vstv %s718
        %v720 = vmul.f32 %v719, %v665
        %v721 = vadd.f32 %v717, %v720
        %s722 = sld [smem:[#allocation13 + $0x300]]
        %v723 = vstv %s722
        %v724 = vmul.f32 %v723, %v695
        %v725 = vadd.f32 %v721, %v724
        %726 = vst [vmem:[%s375] sm:$0xff] %v725
        %s727 = sld [smem:[#allocation14 + $0x1]]
        %s728 = sld [smem:[#allocation13 + $0x1]]
        %v729 = vstv %s728
        %v730 = vmul.f32 %v729, %v515
        %v731 = vstv %s727
        %v732 = vadd.f32 %v731, %v730
        %s733 = sld [smem:[#allocation13 + $0x81]]
        %v734 = vstv %s733
        %v735 = vmul.f32 %v734, %v545
        %v736 = vadd.f32 %v732, %v735
        %s737 = sld [smem:[#allocation13 + $0x101]]
        %v738 = vstv %s737
        %v739 = vmul.f32 %v738, %v575
        %v740 = vadd.f32 %v736, %v739
        %s741 = sld [smem:[#allocation13 + $0x181]]
        %v742 = vstv %s741
        %v743 = vmul.f32 %v742, %v605
        %v744 = vadd.f32 %v740, %v743
        %s745 = sld [smem:[#allocation13 + $0x201]]
        %v746 = vstv %s745
        %v747 = vmul.f32 %v746, %v635
        %v748 = vadd.f32 %v744, %v747
        %s749 = sld [smem:[#allocation13 + $0x281]]
        %v750 = vstv %s749
        %v751 = vmul.f32 %v750, %v665
        %v752 = vadd.f32 %v748, %v751
        %s753 = sld [smem:[#allocation13 + $0x301]]
        %v754 = vstv %s753
        %v755 = vmul.f32 %v754, %v695
        %v756 = vadd.f32 %v752, %v755
        %s757 = scalar_lea.vmem %s375, 8 [#allocation16]
        %758 = vst [vmem:[%s757] sm:$0xff] %v756
        %s759 = sld [smem:[#allocation14 + $0x2]]
        %s760 = sld [smem:[#allocation13 + $0x2]]
        %v761 = vstv %s760
        %v762 = vmul.f32 %v761, %v515
        %v763 = vstv %s759
        %v764 = vadd.f32 %v763, %v762
        %s765 = sld [smem:[#allocation13 + $0x82]]
        %v766 = vstv %s765
        %v767 = vmul.f32 %v766, %v545
        %v768 = vadd.f32 %v764, %v767
        %s769 = sld [smem:[#allocation13 + $0x102]]
        %v770 = vstv %s769
        %v771 = vmul.f32 %v770, %v575
        %v772 = vadd.f32 %v768, %v771
        %s773 = sld [smem:[#allocation13 + $0x182]]
        %v774 = vstv %s773
        %v775 = vmul.f32 %v774, %v605
        %v776 = vadd.f32 %v772, %v775
        %s777 = sld [smem:[#allocation13 + $0x202]]
        %v778 = vstv %s777
        %v779 = vmul.f32 %v778, %v635
        %v780 = vadd.f32 %v776, %v779
        %s781 = sld [smem:[#allocation13 + $0x282]]
        %v782 = vstv %s781
        %v783 = vmul.f32 %v782, %v665
        %v784 = vadd.f32 %v780, %v783
        %s785 = sld [smem:[#allocation13 + $0x302]]
        %v786 = vstv %s785
        %v787 = vmul.f32 %v786, %v695
        %v788 = vadd.f32 %v784, %v787
        %s789 = scalar_lea.vmem %s375, 16 [#allocation16]
        %790 = vst [vmem:[%s789] sm:$0xff] %v788
        %s791 = sand.u32 %s189, 1
        %s792 = scalar_lea.sflag [#allocation4], %s791
        %s793 = sand.u32 %s189, 1
        %s794 = smul.addr %s793, 24
        %s795 = scalar_lea.vmem [#allocation16], %s794
        // Predicated region
        $region77: #{tpu_custom_call.1} parent=47 // pred_check
          %p796 = pneg %p199
        $region78: #{tpu_custom_call.1} parent=47 // pred_check_branch
          %798 = sbr.rel (%p796) target = $region80
        $region79: #{tpu_custom_call.1} parent=47 // pred_region
          %800 = vsyncadd %s792, 0
          %s801 = smul.addr %s29, 8
          %s802 = scalar_lea.hbm %s7, %s801
          %s803 = sshll.u32 %s795, 4
          %s804 = int_to_ptr.vmem [resolvable:$true] %s803
          %s805 = sshll.u32 %s802, 4
          %s806 = int_to_ptr.hbm [resolvable:$true] %s805
          %811 = dma.vmem_to_hbm [thread:$0]  %s804, 384, %s806, %s792, 128, 384, 8
        $region80: #{tpu_custom_call.1} parent=47 // pred_fallthru
          _
      $region48: #{tpu_custom_call.1} parent=5 // pred_fallthru
        _
      %p812 = scmp.le.s32.totalorder 2, %s24
      // Predicated region
      $region81: #{tpu_custom_call.1} parent=5 // pred_check
        %p813 = pneg %p812
      $region82: #{tpu_custom_call.1} parent=5 // pred_check_branch
        %815 = sbr.rel (%p813) target = $region84
      $region83: #{tpu_custom_call.1} parent=5 // pred_region
        %s816 = ssub.s32 %s24, 2
        // Predicated region
        $region85: #{tpu_custom_call.1} parent=83 // pred_check
          %p817 = pneg %p205
        $region86: #{tpu_custom_call.1} parent=83 // pred_check_branch
          %819 = sbr.rel (%p817) target = $region88
        $region87: #{tpu_custom_call.1} parent=83 // pred_region
          %s820 = sand.u32 %s190, 1
          %s821 = scalar_lea.sflag [#allocation4], %s820
          %s822 = sand.u32 %s190, 1
          %s823 = smul.addr %s822, 24
          %s824 = scalar_lea.vmem [#allocation16], %s823
          %826 = dma.done %s821, 384
        $region88: #{tpu_custom_call.1} parent=83 // pred_fallthru
          _
      $region84: #{tpu_custom_call.1} parent=5 // pred_fallthru
        _
    $region6: #{tpu_custom_call.1} parent=1 // loop_footer
      %s28 = sadd.s32 1, %s24
    $region7: #{tpu_custom_call.1} parent=1 // loop_footer_branch
      %23 = sbr.rel target = $region3
    $region8: #{tpu_custom_call.1} parent=1 // loop_exit
      _
    %827 = vsyncpa [#allocation3], 1
    %s828 = scalar_lea.sflag [#allocation3], 1
    %829 = vsyncpa %s828, 1
    %830 = vsyncpa [#allocation4], 1
    %s831 = scalar_lea.sflag [#allocation4], 1
    %832 = vsyncpa %s831, 1
    %833 = vsyncpa [#allocation5], 1
    %s834 = scalar_lea.sflag [#allocation5], 1
    %835 = vsyncpa %s834, 1
    %836 = vsyncpa [#allocation12], 1
    %837 = vsyncpa [#allocation6], 1
    %s838 = scalar_lea.sflag [#allocation6], 1
    %839 = vsyncpa %s838, 1
    %840 = vsyncpa [#allocation10], 1
    %841 = vsyncpa [#allocation15], 1

</llo_original>
